<compile_context>
chip_gen: v6e
topology: v6e:2x2x1
jax: 0.10.0
libtpu: 0.0.40
codegen_flags: <defaults>
</compile_context>

<pallas_src>
import functools

import jax
import jax.numpy as jnp
from jax import lax
from jax.experimental import pallas as pl
from jax.experimental.pallas import tpu as pltpu


# ---------------------------------------------------------------------------
# Kernel
# ---------------------------------------------------------------------------
def lstm_fc_kernel(idx_ref, tab_ref, w_hh_ref, w_fc_ref, b_fc_ref,
                   out_ref, h_scr, c_scr, gx_scr, *, n_split, gate_dtype):
    """One reversed time-chunk of the reverse-direction LSTM (+ fc on last chunk).

    idx_ref : (TT, TB, 1)    int32  token ids for the chunk (chunk order reversed
                                    via the index_map; padded time/batch slots use
                                    the all-zero pad-token row of the fused table)
    tab_ref : (VP, 4*HP)     bf16   fused table: row v = emb[v] @ W_ih + b
                                    (gate order i,f,g,o; rows >= V exactly zero)
    w_hh_ref: (HP, 4*HP)     bf16   hidden->gates weight (transposed, padded)
    w_fc_ref: (HP, OP)       bf16   fc weight (transposed, padded)
    b_fc_ref: (1, OP)        f32    fc bias (padded)
    out_ref : (TB, OP)       f32    fc(h_n[-1])
    h_scr   : (TB, HP)       bf16   recurrent hidden state (persists across chunks)
    c_scr   : (TB, HP)       f32    recurrent cell state   (persists across chunks)
    gx_scr  : (TT, TB, 4*HP) bf16   gathered input projections for the chunk
    """
    TT, TB, _ = idx_ref.shape
    VP = tab_ref.shape[0]
    HP = w_hh_ref.shape[0]
    t_chunk = pl.program_id(1)

    # h_0 = c_0 = 0 (matches torch.zeros in the module's forward).
    @pl.when(t_chunk == 0)
    def _init():
        h_scr[...] = jnp.zeros_like(h_scr)
        c_scr[...] = jnp.zeros_like(c_scr)

    # In-kernel embedding gather fused with the input projection + bias:
    # one-hot(ids) @ (emb @ W_ih + b).  One MXU GEMM per chunk; the embedded
    # sequence never round-trips through HBM.
    ids = idx_ref[...]                                            # (TT, TB, 1)
    iota_v = lax.broadcasted_iota(jnp.int32, (TT, TB, VP), 2)
    onehot = jnp.where(ids == iota_v, 1.0, 0.0).astype(jnp.bfloat16)
    gx = jnp.dot(onehot.reshape(TT * TB, VP), tab_ref[...],
                 preferred_element_type=jnp.float32)              # (TT*TB, 4*HP)
    gx_scr[...] = gx.reshape(TT, TB, 4 * HP).astype(gx_scr.dtype)

    SB = TB // n_split

    def cell(h, c, gx_t):
        # f32 MXU accumulation for the gate pre-activations; nonlinearities in
        # gate_dtype (bf16 EUP on v6e/v7x, f32 on older parts); c math in f32.
        gates = gx_t + jnp.dot(h, w_hh_ref[...],
                               preferred_element_type=jnp.float32)
        gates = gates.astype(gate_dtype)
        i_g = jax.nn.sigmoid(gates[:, 0 * HP:1 * HP])
        f_g = jax.nn.sigmoid(gates[:, 1 * HP:2 * HP])
        g_g = jnp.tanh(gates[:, 2 * HP:3 * HP])
        o_g = jax.nn.sigmoid(gates[:, 3 * HP:4 * HP])
        c_new = f_g * c + i_g * g_g                               # promotes to f32
        h_new = (o_g * jnp.tanh(c_new.astype(gate_dtype))).astype(jnp.bfloat16)
        return h_new, c_new

    # Local (SSA) state per independent batch sub-block; the persistent scratch
    # is read once at chunk start and written once at chunk end.
    h_loc = [h_scr[s * SB:(s + 1) * SB, :] for s in range(n_split)]
    c_loc = [c_scr[s * SB:(s + 1) * SB, :] for s in range(n_split)]

    # Reverse-direction recurrence, fully unrolled.  The n_split sub-blocks are
    # data-independent, so the scheduler can overlap one sub-block's h @ W_hh
    # MXU push with the other's sigmoid/tanh (EUP/VPU) tail.
    for tt in range(TT):
        t_local = TT - 1 - tt                                     # reverse time
        for s in range(n_split):
            gx_t = gx_scr[t_local, s * SB:(s + 1) * SB, :]        # (SB, 4*HP) bf16
            h_loc[s], c_loc[s] = cell(h_loc[s], c_loc[s], gx_t)

    for s in range(n_split):
        h_scr[s * SB:(s + 1) * SB, :] = h_loc[s]
        c_scr[s * SB:(s + 1) * SB, :] = c_loc[s]

    # fc(h_n[-1]) after the last-processed (earliest-time) chunk.
    @pl.when(t_chunk == pl.num_programs(1) - 1)
    def _final():
        out_ref[...] = (jnp.dot(h_scr[...], w_fc_ref[...],
                                preferred_element_type=jnp.float32)
                        + b_fc_ref[...])


# ---------------------------------------------------------------------------
# Wrapper helpers
# ---------------------------------------------------------------------------
def _round_up(x, m):
    return (x + m - 1) // m * m


def _pick_batch_block(BP, cap=256):
    tb = min(BP, cap)
    tb -= tb % 16
    while tb > 16 and BP % tb:
        tb -= 16
    return max(tb, 16)


def _vmem_bytes(TT, TB, HP, OP, VP):
    resident = VP * 4 * HP * 2 + HP * 4 * HP * 2 + HP * OP * 2 + OP * 4
    streamed = TT * TB * 4 + TB * OP * 4
    scratch = TB * HP * (2 + 4) + TT * TB * 4 * HP * 2
    # residents / streams double-buffered by the pipeline.
    return 2 * (resident + streamed) + scratch


def _prepare_params(params, HP, OP, VP):
    """Fused, padded, bf16 parameter layout.

    Zero-padding invariant (relied on for correctness): the padded gate lanes of
    the fused table / W_hh / fc, the padded rows of W_hh, and ALL rows >= V of
    the fused table (bias included — the bias is folded before padding) are
    exactly zero.  Together with h_0 = c_0 = 0 this keeps padded hidden lanes,
    padded batch rows and padded timesteps at exactly h = c = 0.
    """
    emb = params["embedding"]                          # (V, H) f32
    V, H = emb.shape
    O = params["w_fc_t"].shape[1]

    fused = emb @ params["w_ih_t"] + params["b"]       # (V, 4H) f32, bias folded
    tab = jnp.zeros((VP, 4 * HP), jnp.float32)
    w_hh = jnp.zeros((HP, 4 * HP), jnp.float32)
    for g in range(4):
        tab = tab.at[:V, g * HP:g * HP + H].set(fused[:, g * H:(g + 1) * H])
        w_hh = w_hh.at[:H, g * HP:g * HP + H].set(
            params["w_hh_t"][:, g * H:(g + 1) * H])
    w_fc = jnp.zeros((HP, OP), jnp.float32).at[:H, :O].set(params["w_fc_t"])
    b_fc = jnp.zeros((1, OP), jnp.float32).at[:, :O].set(params["b_fc"])
    return (tab.astype(jnp.bfloat16), w_hh.astype(jnp.bfloat16),
            w_fc.astype(jnp.bfloat16), b_fc)


# ---------------------------------------------------------------------------
# Forward
# ---------------------------------------------------------------------------
@functools.partial(jax.jit, static_argnames=("time_chunk",))
def rnn_encoder_forward(input_ids, seq_lengths, params, *, time_chunk=None):
    """input_ids: (batch, seq) int32.  seq_lengths accepted but unused, exactly
    like the PyTorch forward (it never packs the sequence)."""
    del seq_lengths  # unused in the reference forward pass

    B, T = input_ids.shape
    V, H = params["embedding"].shape
    O = params["w_fc_t"].shape[1]

    kind = jax.devices()[0].device_kind.lower()
    old_gen = any(v in kind for v in ("v2", "v3", "v4", "v5"))
    is_v7 = ("v7" in kind) or ("7x" in kind)
    multi_tc = is_v7 or ("v4" in kind) or ("v5p" in kind)
    gate_dtype = jnp.float32 if old_gen else jnp.bfloat16   # bf16 EUP on v6e/v7x
    vmem_budget = (40 if is_v7 else 80) * 1024 * 1024
    vmem_cap = (56 if is_v7 else 100) * 1024 * 1024

    HP = _round_up(H, 128)                  # hidden padded to 128 lanes
    OP = _round_up(O, 128)                  # output padded to 128 lanes
    VP = _round_up(V + 1, 128)              # vocab + dedicated all-zero pad token
    BP = _round_up(B, 16)                   # bf16-native 16-row sublane tiles
    TB = _pick_batch_block(BP)
    if multi_tc and BP // TB == 1 and TB >= 32 and TB % 32 == 0:
        TB //= 2                            # give the second TensorCore work
    nb = BP // TB
    n_split = 2 if TB >= 16 else 1          # independent sub-blocks for ILP

    # TODO(synk): for large vocabularies, replace the VMEM-resident fused table
    # + one-hot gather with a per-row DMA gather from HBM (manual async copies).
    assert VP * 4 * HP * 2 <= 16 * 1024 * 1024, (
        "vocab too large for the VMEM-resident fused-table gather path")

    if time_chunk is not None:
        TT = int(time_chunk)
    else:
        TT = 1
        for tt in (16, 8, 4, 2, 1):
            if _vmem_bytes(tt, TB, HP, OP, VP) <= vmem_budget:
                TT = tt
                break
        TT = min(TT, T)
    num_chunks = -(-T // TT)
    Tpad = num_chunks * TT                  # padded steps hit the zero pad-token
                                            # row and are exact no-ops (h=c stay 0)

    tab, w_hh, w_fc, b_fc = _prepare_params(params, HP, OP, VP)

    pad_id = V                              # an all-zero row of the fused table
    idx = jnp.full((Tpad, BP, 1), pad_id, jnp.int32)
    idx = idx.at[:T, :B, 0].set(jnp.transpose(input_ids, (1, 0)).astype(jnp.int32))

    kernel = functools.partial(lstm_fc_kernel, n_split=n_split,
                               gate_dtype=gate_dtype)
    vmem_limit = int(min(vmem_cap, max(32 * 1024 * 1024,
                                       _vmem_bytes(TT, TB, HP, OP, VP) * 5 // 4)))

    out = pl.pallas_call(
        kernel,
        out_shape=jax.ShapeDtypeStruct((BP, OP), jnp.float32),
        grid_spec=pltpu.PrefetchScalarGridSpec(
            num_scalar_prefetch=0,
            grid=(nb, num_chunks),
            in_specs=[
                # token ids, reversed chunk order over the time axis
                pl.BlockSpec((TT, TB, 1),
                             lambda bb, t: (num_chunks - 1 - t, bb, 0)),
                # grid-invariant (resident) parameters; constant index maps mean
                # they are fetched once.  TODO(synk): single-buffer them
                # (pl.Buffered(1)) once supported by the pallas_call pipeline to
                # halve their VMEM footprint on v7x.
                pl.BlockSpec((VP, 4 * HP), lambda bb, t: (0, 0)),
                pl.BlockSpec((HP, 4 * HP), lambda bb, t: (0, 0)),
                pl.BlockSpec((HP, OP), lambda bb, t: (0, 0)),
                pl.BlockSpec((1, OP), lambda bb, t: (0, 0)),
            ],
            out_specs=pl.BlockSpec((TB, OP), lambda bb, t: (bb, 0)),
            scratch_shapes=[
                pltpu.VMEM((TB, HP), jnp.bfloat16),          # h (bf16)
                pltpu.VMEM((TB, HP), jnp.float32),           # c (f32)
                pltpu.VMEM((TT, TB, 4 * HP), jnp.bfloat16),  # gathered gates_x
            ],
        ),
        compiler_params=pltpu.CompilerParams(
            dimension_semantics=("parallel", "arbitrary"),
            vmem_limit_bytes=vmem_limit,
        ),
    )(idx, tab, w_hh, w_fc, b_fc)

    return out[:B, :O]


# ---------------------------------------------------------------------------
# Pure-JAX reference (same math, f32) and synthetic parameters
# ---------------------------------------------------------------------------
def reference_forward(input_ids, params):
    emb_table = params["embedding"]
    w_ih_t, w_hh_t, b = params["w_ih_t"], params["w_hh_t"], params["b"]
    w_fc_t, b_fc = params["w_fc_t"], params["b_fc"]
    H = emb_table.shape[1]

    idx_tm = jnp.transpose(input_ids, (1, 0)).astype(jnp.int32)
    embedded = jnp.take(emb_table, idx_tm, axis=0)                  # (T, B, H)
    T, B, _ = embedded.shape

    h = jnp.zeros((B, H), jnp.float32)
    c = jnp.zeros((B, H), jnp.float32)
    for t in range(T - 1, -1, -1):                                  # reverse dir
        x = embedded[t]
        gates = x @ w_ih_t + h @ w_hh_t + b
        i_g = jax.nn.sigmoid(gates[:, 0 * H:1 * H])
        f_g = jax.nn.sigmoid(gates[:, 1 * H:2 * H])
        g_g = jnp.tanh(gates[:, 2 * H:3 * H])
        o_g = jax.nn.sigmoid(gates[:, 3 * H:4 * H])
        c = f_g * c + i_g * g_g
        h = o_g * jnp.tanh(c)
    return h @ w_fc_t + b_fc


def init_params(key, input_size, hidden_size, output_size):
    """Synthetic parameters with the shapes nn.Embedding / nn.LSTM(bidirectional)
    / nn.Linear would create (reverse-direction LSTM weights only, since only
    h_n[-1] is consumed)."""
    k = jax.random.split(key, 7)
    H, O = hidden_size, output_size
    s = 1.0 / jnp.sqrt(jnp.float32(H))
    emb = jax.random.normal(k[0], (input_size, H), jnp.float32)
    w_ih_t = jax.random.uniform(k[1], (H, 4 * H), jnp.float32, -s, s)
    w_hh_t = jax.random.uniform(k[2], (H, 4 * H), jnp.float32, -s, s)
    b_ih = jax.random.uniform(k[3], (1, 4 * H), jnp.float32, -s, s)
    b_hh = jax.random.uniform(k[4], (1, 4 * H), jnp.float32, -s, s)
    w_fc_t = jax.random.uniform(k[5], (H, O), jnp.float32, -s, s)
    b_fc = jax.random.uniform(k[6], (1, O), jnp.float32, -s, s)
    return {
        "embedding": emb,
        "w_ih_t": w_ih_t,
        "w_hh_t": w_hh_t,
        "b": b_ih + b_hh,
        "w_fc_t": w_fc_t,
        "b_fc": b_fc,
    }


if __name__ == "__main__":
    # Small shapes: vocab(input_size)=16, hidden=32, output=10, batch=2, seq=8
    INPUT_SIZE, HIDDEN, OUTPUT = 16, 32, 10
    BATCH, SEQ = 2, 8

    key = jax.random.PRNGKey(0)
    k_in, k_par = jax.random.split(key)

    input_ids = jax.random.randint(k_in, (BATCH, SEQ), 0, INPUT_SIZE, jnp.int32)
    seq_lengths = jnp.full((BATCH,), SEQ, jnp.int32)   # accepted but unused
    params = init_params(k_par, INPUT_SIZE, HIDDEN, OUTPUT)

    # time_chunk=3 -> 3 grid steps over time with one padded (no-op) timestep:
    # exercises the pipelined chunk grid, the state carry and the time padding.
    out = rnn_encoder_forward(input_ids, seq_lengths, params, time_chunk=3)
    out = jax.block_until_ready(out)

    ref = reference_forward(input_ids, params)
    assert out.shape == (BATCH, OUTPUT)
    err = float(jnp.max(jnp.abs(out - ref)))
    assert jnp.allclose(out, ref, atol=3e-2, rtol=3e-2), f"max abs err {err}"

    print("KERNEL_OK")
</pallas_src>

<mosaic_0001>
module attributes {stable_mosaic.version = 11 : i64} {
  func.func @lstm_fc_kernel(%arg0: i32, %arg1: i32, %arg2: memref<3x16x1xi32, #tpu.memory_space<vmem>>, %arg3: memref<128x512xbf16, #tpu.memory_space<vmem>>, %arg4: memref<128x512xbf16, #tpu.memory_space<vmem>>, %arg5: memref<128x128xbf16, #tpu.memory_space<vmem>>, %arg6: memref<1x128xf32, #tpu.memory_space<vmem>>, %arg7: memref<16x128xf32, #tpu.memory_space<vmem>>, %arg8: memref<16x128xbf16, #tpu.memory_space<vmem>>, %arg9: memref<16x128xf32, #tpu.memory_space<vmem>>, %arg10: memref<3x16x512xbf16, #tpu.memory_space<vmem>>) attributes {dimension_semantics = [#tpu.dimension_semantics<parallel>, #tpu.dimension_semantics<arbitrary>], iteration_bounds = array<i64: 1, 3>, scalar_prefetch = 0 : i64, scratch_operands = 3 : i64, tpu.core_type = #tpu.core_type<tc>, window_params = [{transform_indices = @transform_0, window_bounds = array<i64: 3, 16, 1>}, {pipeline_mode = #tpu.pipeline_mode<synchronous>, transform_indices = @transform_1, window_bounds = array<i64: 128, 512>}, {pipeline_mode = #tpu.pipeline_mode<synchronous>, transform_indices = @transform_2, window_bounds = array<i64: 128, 512>}, {pipeline_mode = #tpu.pipeline_mode<synchronous>, transform_indices = @transform_3, window_bounds = array<i64: 128, 128>}, {pipeline_mode = #tpu.pipeline_mode<synchronous>, transform_indices = @transform_4, window_bounds = array<i64: 1, 128>}, {transform_indices = @transform_5, window_bounds = array<i64: 16, 128>}]} {
    %c0_i32 = arith.constant 0 : i32
    %0 = arith.cmpi eq, %arg1, %c0_i32 : i32
    %1 = arith.extui %0 : i1 to i32
    %c0_i32_0 = arith.constant 0 : i32
    %2 = arith.cmpi ne, %1, %c0_i32_0 : i32
    scf.if %2 {
      %cst_78 = arith.constant 0.000000e+00 : bf16
      %238 = vector.broadcast %cst_78 : bf16 to vector<16x128xbf16>
      %c0_79 = arith.constant 0 : index
      %c0_80 = arith.constant 0 : index
      %239 = vector.load %arg8[%c0_79, %c0_80] : memref<16x128xbf16, #tpu.memory_space<vmem>>, vector<16x128xbf16>
      tpu.vector_store %arg8[%c0_79, %c0_80], %238 {strides = array<i32>} : memref<16x128xbf16, #tpu.memory_space<vmem>>, vector<16x128xbf16>,
      %cst_81 = arith.constant 0.000000e+00 : f32
      %240 = vector.broadcast %cst_81 : f32 to vector<16x128xf32>
      %c0_82 = arith.constant 0 : index
      %c0_83 = arith.constant 0 : index
      %241 = vector.load %arg9[%c0_82, %c0_83] : memref<16x128xf32, #tpu.memory_space<vmem>>, vector<16x128xf32>
      tpu.vector_store %arg9[%c0_82, %c0_83], %240 {strides = array<i32>} : memref<16x128xf32, #tpu.memory_space<vmem>>, vector<16x128xf32>,
    } else {
    }
    %c0 = arith.constant 0 : index
    %c0_1 = arith.constant 0 : index
    %c0_2 = arith.constant 0 : index
    %3 = vector.load %arg2[%c0, %c0_1, %c0_2] : memref<3x16x1xi32, #tpu.memory_space<vmem>>, vector<3x16x1xi32>
    %4 = tpu.iota {dimensions = array<i32: 2>} : vector<3x16x128xi32>
    %5 = vector.broadcast %3 : vector<3x16x1xi32> to vector<3x16x128xi32>
    %6 = arith.cmpi eq, %5, %4 : vector<3x16x128xi32>
    %cst = arith.constant 1.000000e+00 : f32
    %cst_3 = arith.constant 0.000000e+00 : f32
    %7 = vector.broadcast %cst : f32 to vector<3x16x128xf32>
    %8 = vector.broadcast %cst_3 : f32 to vector<3x16x128xf32>
    %9 = arith.select %6, %7, %8 : vector<3x16x128xi1>, vector<3x16x128xf32>
    %10 = arith.truncf %9 : vector<3x16x128xf32> to vector<3x16x128xbf16>
    %11 = vector.shape_cast %10 : vector<3x16x128xbf16> to vector<48x128xbf16>
    %c0_4 = arith.constant 0 : index
    %c0_5 = arith.constant 0 : index
    %12 = vector.load %arg3[%c0_4, %c0_5] : memref<128x512xbf16, #tpu.memory_space<vmem>>, vector<128x512xbf16>
    %cst_6 = arith.constant dense<0.000000e+00> : vector<48x512xf32>
    %13 = tpu.matmul %11, %12, %cst_6 {dimension_numbers = #tpu.dot_dimension_numbers<[1], [0], [0], [1], [0, 0, 1, 1], [], []>} : vector<48x128xbf16>, vector<128x512xbf16>, vector<48x512xf32> -> vector<48x512xf32>
    %14 = vector.shape_cast %13 : vector<48x512xf32> to vector<3x16x512xf32>
    %15 = arith.truncf %14 : vector<3x16x512xf32> to vector<3x16x512xbf16>
    %c0_7 = arith.constant 0 : index
    %c0_8 = arith.constant 0 : index
    %c0_9 = arith.constant 0 : index
    %16 = vector.load %arg10[%c0_7, %c0_8, %c0_9] : memref<3x16x512xbf16, #tpu.memory_space<vmem>>, vector<3x16x512xbf16>
    tpu.vector_store %arg10[%c0_7, %c0_8, %c0_9], %15 {strides = array<i32>} : memref<3x16x512xbf16, #tpu.memory_space<vmem>>, vector<3x16x512xbf16>,
    %c0_10 = arith.constant 0 : index
    %c0_11 = arith.constant 0 : index
    %17 = vector.load %arg8[%c0_10, %c0_11] : memref<16x128xbf16, #tpu.memory_space<vmem>>, vector<8x128xbf16>
    %c8 = arith.constant 8 : index
    %c0_12 = arith.constant 0 : index
    %18 = vector.load %arg8[%c8, %c0_12] : memref<16x128xbf16, #tpu.memory_space<vmem>>, vector<8x128xbf16>
    %c0_13 = arith.constant 0 : index
    %c0_14 = arith.constant 0 : index
    %19 = vector.load %arg9[%c0_13, %c0_14] : memref<16x128xf32, #tpu.memory_space<vmem>>, vector<8x128xf32>
    %c8_15 = arith.constant 8 : index
    %c0_16 = arith.constant 0 : index
    %20 = vector.load %arg9[%c8_15, %c0_16] : memref<16x128xf32, #tpu.memory_space<vmem>>, vector<8x128xf32>
    %c2 = arith.constant 2 : index
    %c0_17 = arith.constant 0 : index
    %c0_18 = arith.constant 0 : index
    %21 = vector.load %arg10[%c2, %c0_17, %c0_18] : memref<3x16x512xbf16, #tpu.memory_space<vmem>>, vector<1x8x512xbf16>
    %22 = vector.shape_cast %21 : vector<1x8x512xbf16> to vector<8x512xbf16>
    %c0_19 = arith.constant 0 : index
    %c0_20 = arith.constant 0 : index
    %23 = vector.load %arg4[%c0_19, %c0_20] : memref<128x512xbf16, #tpu.memory_space<vmem>>, vector<128x512xbf16>
    %cst_21 = arith.constant dense<0.000000e+00> : vector<8x512xf32>
    %24 = tpu.matmul %17, %23, %cst_21 {dimension_numbers = #tpu.dot_dimension_numbers<[1], [0], [0], [1], [0, 0, 1, 1], [], []>} : vector<8x128xbf16>, vector<128x512xbf16>, vector<8x512xf32> -> vector<8x512xf32>
    %25 = arith.extf %22 : vector<8x512xbf16> to vector<8x512xf32>
    %26 = arith.addf %25, %24 : vector<8x512xf32>
    %27 = arith.truncf %26 : vector<8x512xf32> to vector<8x512xbf16>
    %28 = vector.extract_strided_slice %27 {offsets = [0, 0], sizes = [8, 128], strides = [1, 1]} : vector<8x512xbf16> to vector<8x128xbf16>
    %29 = arith.negf %28 : vector<8x128xbf16>
    %30 = math.exp %29 : vector<8x128xbf16>
    %cst_22 = arith.constant 1.000000e+00 : bf16
    %31 = vector.broadcast %cst_22 : bf16 to vector<8x128xbf16>
    %32 = arith.addf %31, %30 : vector<8x128xbf16>
    %33 = arith.divf %31, %32 : vector<8x128xbf16>
    %34 = vector.extract_strided_slice %27 {offsets = [0, 128], sizes = [8, 128], strides = [1, 1]} : vector<8x512xbf16> to vector<8x128xbf16>
    %35 = arith.negf %34 : vector<8x128xbf16>
    %36 = math.exp %35 : vector<8x128xbf16>
    %cst_23 = arith.constant 1.000000e+00 : bf16
    %37 = vector.broadcast %cst_23 : bf16 to vector<8x128xbf16>
    %38 = arith.addf %37, %36 : vector<8x128xbf16>
    %39 = arith.divf %37, %38 : vector<8x128xbf16>
    %40 = vector.extract_strided_slice %27 {offsets = [0, 256], sizes = [8, 128], strides = [1, 1]} : vector<8x512xbf16> to vector<8x128xbf16>
    %41 = math.tanh %40 : vector<8x128xbf16>
    %42 = vector.extract_strided_slice %27 {offsets = [0, 384], sizes = [8, 128], strides = [1, 1]} : vector<8x512xbf16> to vector<8x128xbf16>
    %43 = arith.negf %42 : vector<8x128xbf16>
    %44 = math.exp %43 : vector<8x128xbf16>
    %cst_24 = arith.constant 1.000000e+00 : bf16
    %45 = vector.broadcast %cst_24 : bf16 to vector<8x128xbf16>
    %46 = arith.addf %45, %44 : vector<8x128xbf16>
    %47 = arith.divf %45, %46 : vector<8x128xbf16>
    %48 = arith.extf %39 : vector<8x128xbf16> to vector<8x128xf32>
    %49 = arith.mulf %48, %19 : vector<8x128xf32>
    %50 = arith.mulf %33, %41 : vector<8x128xbf16>
    %51 = arith.extf %50 : vector<8x128xbf16> to vector<8x128xf32>
    %52 = arith.addf %49, %51 : vector<8x128xf32>
    %53 = arith.truncf %52 : vector<8x128xf32> to vector<8x128xbf16>
    %54 = math.tanh %53 : vector<8x128xbf16>
    %55 = arith.mulf %47, %54 : vector<8x128xbf16>
    %c2_25 = arith.constant 2 : index
    %c8_26 = arith.constant 8 : index
    %c0_27 = arith.constant 0 : index
    %56 = vector.load %arg10[%c2_25, %c8_26, %c0_27] : memref<3x16x512xbf16, #tpu.memory_space<vmem>>, vector<1x8x512xbf16>
    %57 = vector.shape_cast %56 : vector<1x8x512xbf16> to vector<8x512xbf16>
    %c0_28 = arith.constant 0 : index
    %c0_29 = arith.constant 0 : index
    %58 = vector.load %arg4[%c0_28, %c0_29] : memref<128x512xbf16, #tpu.memory_space<vmem>>, vector<128x512xbf16>
    %cst_30 = arith.constant dense<0.000000e+00> : vector<8x512xf32>
    %59 = tpu.matmul %18, %58, %cst_30 {dimension_numbers = #tpu.dot_dimension_numbers<[1], [0], [0], [1], [0, 0, 1, 1], [], []>} : vector<8x128xbf16>, vector<128x512xbf16>, vector<8x512xf32> -> vector<8x512xf32>
    %60 = arith.extf %57 : vector<8x512xbf16> to vector<8x512xf32>
    %61 = arith.addf %60, %59 : vector<8x512xf32>
    %62 = arith.truncf %61 : vector<8x512xf32> to vector<8x512xbf16>
    %63 = vector.extract_strided_slice %62 {offsets = [0, 0], sizes = [8, 128], strides = [1, 1]} : vector<8x512xbf16> to vector<8x128xbf16>
    %64 = arith.negf %63 : vector<8x128xbf16>
    %65 = math.exp %64 : vector<8x128xbf16>
    %cst_31 = arith.constant 1.000000e+00 : bf16
    %66 = vector.broadcast %cst_31 : bf16 to vector<8x128xbf16>
    %67 = arith.addf %66, %65 : vector<8x128xbf16>
    %68 = arith.divf %66, %67 : vector<8x128xbf16>
    %69 = vector.extract_strided_slice %62 {offsets = [0, 128], sizes = [8, 128], strides = [1, 1]} : vector<8x512xbf16> to vector<8x128xbf16>
    %70 = arith.negf %69 : vector<8x128xbf16>
    %71 = math.exp %70 : vector<8x128xbf16>
    %cst_32 = arith.constant 1.000000e+00 : bf16
    %72 = vector.broadcast %cst_32 : bf16 to vector<8x128xbf16>
    %73 = arith.addf %72, %71 : vector<8x128xbf16>
    %74 = arith.divf %72, %73 : vector<8x128xbf16>
    %75 = vector.extract_strided_slice %62 {offsets = [0, 256], sizes = [8, 128], strides = [1, 1]} : vector<8x512xbf16> to vector<8x128xbf16>
    %76 = math.tanh %75 : vector<8x128xbf16>
    %77 = vector.extract_strided_slice %62 {offsets = [0, 384], sizes = [8, 128], strides = [1, 1]} : vector<8x512xbf16> to vector<8x128xbf16>
    %78 = arith.negf %77 : vector<8x128xbf16>
    %79 = math.exp %78 : vector<8x128xbf16>
    %cst_33 = arith.constant 1.000000e+00 : bf16
    %80 = vector.broadcast %cst_33 : bf16 to vector<8x128xbf16>
    %81 = arith.addf %80, %79 : vector<8x128xbf16>
    %82 = arith.divf %80, %81 : vector<8x128xbf16>
    %83 = arith.extf %74 : vector<8x128xbf16> to vector<8x128xf32>
    %84 = arith.mulf %83, %20 : vector<8x128xf32>
    %85 = arith.mulf %68, %76 : vector<8x128xbf16>
    %86 = arith.extf %85 : vector<8x128xbf16> to vector<8x128xf32>
    %87 = arith.addf %84, %86 : vector<8x128xf32>
    %88 = arith.truncf %87 : vector<8x128xf32> to vector<8x128xbf16>
    %89 = math.tanh %88 : vector<8x128xbf16>
    %90 = arith.mulf %82, %89 : vector<8x128xbf16>
    %c1 = arith.constant 1 : index
    %c0_34 = arith.constant 0 : index
    %c0_35 = arith.constant 0 : index
    %91 = vector.load %arg10[%c1, %c0_34, %c0_35] : memref<3x16x512xbf16, #tpu.memory_space<vmem>>, vector<1x8x512xbf16>
    %92 = vector.shape_cast %91 : vector<1x8x512xbf16> to vector<8x512xbf16>
    %c0_36 = arith.constant 0 : index
    %c0_37 = arith.constant 0 : index
    %93 = vector.load %arg4[%c0_36, %c0_37] : memref<128x512xbf16, #tpu.memory_space<vmem>>, vector<128x512xbf16>
    %cst_38 = arith.constant dense<0.000000e+00> : vector<8x512xf32>
    %94 = tpu.matmul %55, %93, %cst_38 {dimension_numbers = #tpu.dot_dimension_numbers<[1], [0], [0], [1], [0, 0, 1, 1], [], []>} : vector<8x128xbf16>, vector<128x512xbf16>, vector<8x512xf32> -> vector<8x512xf32>
    %95 = arith.extf %92 : vector<8x512xbf16> to vector<8x512xf32>
    %96 = arith.addf %95, %94 : vector<8x512xf32>
    %97 = arith.truncf %96 : vector<8x512xf32> to vector<8x512xbf16>
    %98 = vector.extract_strided_slice %97 {offsets = [0, 0], sizes = [8, 128], strides = [1, 1]} : vector<8x512xbf16> to vector<8x128xbf16>
    %99 = arith.negf %98 : vector<8x128xbf16>
    %100 = math.exp %99 : vector<8x128xbf16>
    %cst_39 = arith.constant 1.000000e+00 : bf16
    %101 = vector.broadcast %cst_39 : bf16 to vector<8x128xbf16>
    %102 = arith.addf %101, %100 : vector<8x128xbf16>
    %103 = arith.divf %101, %102 : vector<8x128xbf16>
    %104 = vector.extract_strided_slice %97 {offsets = [0, 128], sizes = [8, 128], strides = [1, 1]} : vector<8x512xbf16> to vector<8x128xbf16>
    %105 = arith.negf %104 : vector<8x128xbf16>
    %106 = math.exp %105 : vector<8x128xbf16>
    %cst_40 = arith.constant 1.000000e+00 : bf16
    %107 = vector.broadcast %cst_40 : bf16 to vector<8x128xbf16>
    %108 = arith.addf %107, %106 : vector<8x128xbf16>
    %109 = arith.divf %107, %108 : vector<8x128xbf16>
    %110 = vector.extract_strided_slice %97 {offsets = [0, 256], sizes = [8, 128], strides = [1, 1]} : vector<8x512xbf16> to vector<8x128xbf16>
    %111 = math.tanh %110 : vector<8x128xbf16>
    %112 = vector.extract_strided_slice %97 {offsets = [0, 384], sizes = [8, 128], strides = [1, 1]} : vector<8x512xbf16> to vector<8x128xbf16>
    %113 = arith.negf %112 : vector<8x128xbf16>
    %114 = math.exp %113 : vector<8x128xbf16>
    %cst_41 = arith.constant 1.000000e+00 : bf16
    %115 = vector.broadcast %cst_41 : bf16 to vector<8x128xbf16>
    %116 = arith.addf %115, %114 : vector<8x128xbf16>
    %117 = arith.divf %115, %116 : vector<8x128xbf16>
    %118 = arith.extf %109 : vector<8x128xbf16> to vector<8x128xf32>
    %119 = arith.mulf %118, %52 : vector<8x128xf32>
    %120 = arith.mulf %103, %111 : vector<8x128xbf16>
    %121 = arith.extf %120 : vector<8x128xbf16> to vector<8x128xf32>
    %122 = arith.addf %119, %121 : vector<8x128xf32>
    %123 = arith.truncf %122 : vector<8x128xf32> to vector<8x128xbf16>
    %124 = math.tanh %123 : vector<8x128xbf16>
    %125 = arith.mulf %117, %124 : vector<8x128xbf16>
    %c1_42 = arith.constant 1 : index
    %c8_43 = arith.constant 8 : index
    %c0_44 = arith.constant 0 : index
    %126 = vector.load %arg10[%c1_42, %c8_43, %c0_44] : memref<3x16x512xbf16, #tpu.memory_space<vmem>>, vector<1x8x512xbf16>
    %127 = vector.shape_cast %126 : vector<1x8x512xbf16> to vector<8x512xbf16>
    %c0_45 = arith.constant 0 : index
    %c0_46 = arith.constant 0 : index
    %128 = vector.load %arg4[%c0_45, %c0_46] : memref<128x512xbf16, #tpu.memory_space<vmem>>, vector<128x512xbf16>
    %cst_47 = arith.constant dense<0.000000e+00> : vector<8x512xf32>
    %129 = tpu.matmul %90, %128, %cst_47 {dimension_numbers = #tpu.dot_dimension_numbers<[1], [0], [0], [1], [0, 0, 1, 1], [], []>} : vector<8x128xbf16>, vector<128x512xbf16>, vector<8x512xf32> -> vector<8x512xf32>
    %130 = arith.extf %127 : vector<8x512xbf16> to vector<8x512xf32>
    %131 = arith.addf %130, %129 : vector<8x512xf32>
    %132 = arith.truncf %131 : vector<8x512xf32> to vector<8x512xbf16>
    %133 = vector.extract_strided_slice %132 {offsets = [0, 0], sizes = [8, 128], strides = [1, 1]} : vector<8x512xbf16> to vector<8x128xbf16>
    %134 = arith.negf %133 : vector<8x128xbf16>
    %135 = math.exp %134 : vector<8x128xbf16>
    %cst_48 = arith.constant 1.000000e+00 : bf16
    %136 = vector.broadcast %cst_48 : bf16 to vector<8x128xbf16>
    %137 = arith.addf %136, %135 : vector<8x128xbf16>
    %138 = arith.divf %136, %137 : vector<8x128xbf16>
    %139 = vector.extract_strided_slice %132 {offsets = [0, 128], sizes = [8, 128], strides = [1, 1]} : vector<8x512xbf16> to vector<8x128xbf16>
    %140 = arith.negf %139 : vector<8x128xbf16>
    %141 = math.exp %140 : vector<8x128xbf16>
    %cst_49 = arith.constant 1.000000e+00 : bf16
    %142 = vector.broadcast %cst_49 : bf16 to vector<8x128xbf16>
    %143 = arith.addf %142, %141 : vector<8x128xbf16>
    %144 = arith.divf %142, %143 : vector<8x128xbf16>
    %145 = vector.extract_strided_slice %132 {offsets = [0, 256], sizes = [8, 128], strides = [1, 1]} : vector<8x512xbf16> to vector<8x128xbf16>
    %146 = math.tanh %145 : vector<8x128xbf16>
    %147 = vector.extract_strided_slice %132 {offsets = [0, 384], sizes = [8, 128], strides = [1, 1]} : vector<8x512xbf16> to vector<8x128xbf16>
    %148 = arith.negf %147 : vector<8x128xbf16>
    %149 = math.exp %148 : vector<8x128xbf16>
    %cst_50 = arith.constant 1.000000e+00 : bf16
    %150 = vector.broadcast %cst_50 : bf16 to vector<8x128xbf16>
    %151 = arith.addf %150, %149 : vector<8x128xbf16>
    %152 = arith.divf %150, %151 : vector<8x128xbf16>
    %153 = arith.extf %144 : vector<8x128xbf16> to vector<8x128xf32>
    %154 = arith.mulf %153, %87 : vector<8x128xf32>
    %155 = arith.mulf %138, %146 : vector<8x128xbf16>
    %156 = arith.extf %155 : vector<8x128xbf16> to vector<8x128xf32>
    %157 = arith.addf %154, %156 : vector<8x128xf32>
    %158 = arith.truncf %157 : vector<8x128xf32> to vector<8x128xbf16>
    %159 = math.tanh %158 : vector<8x128xbf16>
    %160 = arith.mulf %152, %159 : vector<8x128xbf16>
    %c0_51 = arith.constant 0 : index
    %c0_52 = arith.constant 0 : index
    %c0_53 = arith.constant 0 : index
    %161 = vector.load %arg10[%c0_51, %c0_52, %c0_53] : memref<3x16x512xbf16, #tpu.memory_space<vmem>>, vector<1x8x512xbf16>
    %162 = vector.shape_cast %161 : vector<1x8x512xbf16> to vector<8x512xbf16>
    %c0_54 = arith.constant 0 : index
    %c0_55 = arith.constant 0 : index
    %163 = vector.load %arg4[%c0_54, %c0_55] : memref<128x512xbf16, #tpu.memory_space<vmem>>, vector<128x512xbf16>
    %cst_56 = arith.constant dense<0.000000e+00> : vector<8x512xf32>
    %164 = tpu.matmul %125, %163, %cst_56 {dimension_numbers = #tpu.dot_dimension_numbers<[1], [0], [0], [1], [0, 0, 1, 1], [], []>} : vector<8x128xbf16>, vector<128x512xbf16>, vector<8x512xf32> -> vector<8x512xf32>
    %165 = arith.extf %162 : vector<8x512xbf16> to vector<8x512xf32>
    %166 = arith.addf %165, %164 : vector<8x512xf32>
    %167 = arith.truncf %166 : vector<8x512xf32> to vector<8x512xbf16>
    %168 = vector.extract_strided_slice %167 {offsets = [0, 0], sizes = [8, 128], strides = [1, 1]} : vector<8x512xbf16> to vector<8x128xbf16>
    %169 = arith.negf %168 : vector<8x128xbf16>
    %170 = math.exp %169 : vector<8x128xbf16>
    %cst_57 = arith.constant 1.000000e+00 : bf16
    %171 = vector.broadcast %cst_57 : bf16 to vector<8x128xbf16>
    %172 = arith.addf %171, %170 : vector<8x128xbf16>
    %173 = arith.divf %171, %172 : vector<8x128xbf16>
    %174 = vector.extract_strided_slice %167 {offsets = [0, 128], sizes = [8, 128], strides = [1, 1]} : vector<8x512xbf16> to vector<8x128xbf16>
    %175 = arith.negf %174 : vector<8x128xbf16>
    %176 = math.exp %175 : vector<8x128xbf16>
    %cst_58 = arith.constant 1.000000e+00 : bf16
    %177 = vector.broadcast %cst_58 : bf16 to vector<8x128xbf16>
    %178 = arith.addf %177, %176 : vector<8x128xbf16>
    %179 = arith.divf %177, %178 : vector<8x128xbf16>
    %180 = vector.extract_strided_slice %167 {offsets = [0, 256], sizes = [8, 128], strides = [1, 1]} : vector<8x512xbf16> to vector<8x128xbf16>
    %181 = math.tanh %180 : vector<8x128xbf16>
    %182 = vector.extract_strided_slice %167 {offsets = [0, 384], sizes = [8, 128], strides = [1, 1]} : vector<8x512xbf16> to vector<8x128xbf16>
    %183 = arith.negf %182 : vector<8x128xbf16>
    %184 = math.exp %183 : vector<8x128xbf16>
    %cst_59 = arith.constant 1.000000e+00 : bf16
    %185 = vector.broadcast %cst_59 : bf16 to vector<8x128xbf16>
    %186 = arith.addf %185, %184 : vector<8x128xbf16>
    %187 = arith.divf %185, %186 : vector<8x128xbf16>
    %188 = arith.extf %179 : vector<8x128xbf16> to vector<8x128xf32>
    %189 = arith.mulf %188, %122 : vector<8x128xf32>
    %190 = arith.mulf %173, %181 : vector<8x128xbf16>
    %191 = arith.extf %190 : vector<8x128xbf16> to vector<8x128xf32>
    %192 = arith.addf %189, %191 : vector<8x128xf32>
    %193 = arith.truncf %192 : vector<8x128xf32> to vector<8x128xbf16>
    %194 = math.tanh %193 : vector<8x128xbf16>
    %195 = arith.mulf %187, %194 : vector<8x128xbf16>
    %c0_60 = arith.constant 0 : index
    %c8_61 = arith.constant 8 : index
    %c0_62 = arith.constant 0 : index
    %196 = vector.load %arg10[%c0_60, %c8_61, %c0_62] : memref<3x16x512xbf16, #tpu.memory_space<vmem>>, vector<1x8x512xbf16>
    %197 = vector.shape_cast %196 : vector<1x8x512xbf16> to vector<8x512xbf16>
    %c0_63 = arith.constant 0 : index
    %c0_64 = arith.constant 0 : index
    %198 = vector.load %arg4[%c0_63, %c0_64] : memref<128x512xbf16, #tpu.memory_space<vmem>>, vector<128x512xbf16>
    %cst_65 = arith.constant dense<0.000000e+00> : vector<8x512xf32>
    %199 = tpu.matmul %160, %198, %cst_65 {dimension_numbers = #tpu.dot_dimension_numbers<[1], [0], [0], [1], [0, 0, 1, 1], [], []>} : vector<8x128xbf16>, vector<128x512xbf16>, vector<8x512xf32> -> vector<8x512xf32>
    %200 = arith.extf %197 : vector<8x512xbf16> to vector<8x512xf32>
    %201 = arith.addf %200, %199 : vector<8x512xf32>
    %202 = arith.truncf %201 : vector<8x512xf32> to vector<8x512xbf16>
    %203 = vector.extract_strided_slice %202 {offsets = [0, 0], sizes = [8, 128], strides = [1, 1]} : vector<8x512xbf16> to vector<8x128xbf16>
    %204 = arith.negf %203 : vector<8x128xbf16>
    %205 = math.exp %204 : vector<8x128xbf16>
    %cst_66 = arith.constant 1.000000e+00 : bf16
    %206 = vector.broadcast %cst_66 : bf16 to vector<8x128xbf16>
    %207 = arith.addf %206, %205 : vector<8x128xbf16>
    %208 = arith.divf %206, %207 : vector<8x128xbf16>
    %209 = vector.extract_strided_slice %202 {offsets = [0, 128], sizes = [8, 128], strides = [1, 1]} : vector<8x512xbf16> to vector<8x128xbf16>
    %210 = arith.negf %209 : vector<8x128xbf16>
    %211 = math.exp %210 : vector<8x128xbf16>
    %cst_67 = arith.constant 1.000000e+00 : bf16
    %212 = vector.broadcast %cst_67 : bf16 to vector<8x128xbf16>
    %213 = arith.addf %212, %211 : vector<8x128xbf16>
    %214 = arith.divf %212, %213 : vector<8x128xbf16>
    %215 = vector.extract_strided_slice %202 {offsets = [0, 256], sizes = [8, 128], strides = [1, 1]} : vector<8x512xbf16> to vector<8x128xbf16>
    %216 = math.tanh %215 : vector<8x128xbf16>
    %217 = vector.extract_strided_slice %202 {offsets = [0, 384], sizes = [8, 128], strides = [1, 1]} : vector<8x512xbf16> to vector<8x128xbf16>
    %218 = arith.negf %217 : vector<8x128xbf16>
    %219 = math.exp %218 : vector<8x128xbf16>
    %cst_68 = arith.constant 1.000000e+00 : bf16
    %220 = vector.broadcast %cst_68 : bf16 to vector<8x128xbf16>
    %221 = arith.addf %220, %219 : vector<8x128xbf16>
    %222 = arith.divf %220, %221 : vector<8x128xbf16>
    %223 = arith.extf %214 : vector<8x128xbf16> to vector<8x128xf32>
    %224 = arith.mulf %223, %157 : vector<8x128xf32>
    %225 = arith.mulf %208, %216 : vector<8x128xbf16>
    %226 = arith.extf %225 : vector<8x128xbf16> to vector<8x128xf32>
    %227 = arith.addf %224, %226 : vector<8x128xf32>
    %228 = arith.truncf %227 : vector<8x128xf32> to vector<8x128xbf16>
    %229 = math.tanh %228 : vector<8x128xbf16>
    %230 = arith.mulf %222, %229 : vector<8x128xbf16>
    %c0_69 = arith.constant 0 : index
    %c0_70 = arith.constant 0 : index
    %231 = vector.load %arg8[%c0_69, %c0_70] : memref<16x128xbf16, #tpu.memory_space<vmem>>, vector<8x128xbf16>
    tpu.vector_store %arg8[%c0_69, %c0_70], %195 {strides = array<i32>} : memref<16x128xbf16, #tpu.memory_space<vmem>>, vector<8x128xbf16>,
    %c0_71 = arith.constant 0 : index
    %c0_72 = arith.constant 0 : index
    %232 = vector.load %arg9[%c0_71, %c0_72] : memref<16x128xf32, #tpu.memory_space<vmem>>, vector<8x128xf32>
    tpu.vector_store %arg9[%c0_71, %c0_72], %192 {strides = array<i32>} : memref<16x128xf32, #tpu.memory_space<vmem>>, vector<8x128xf32>,
    %c8_73 = arith.constant 8 : index
    %c0_74 = arith.constant 0 : index
    %233 = vector.load %arg8[%c8_73, %c0_74] : memref<16x128xbf16, #tpu.memory_space<vmem>>, vector<8x128xbf16>
    tpu.vector_store %arg8[%c8_73, %c0_74], %230 {strides = array<i32>} : memref<16x128xbf16, #tpu.memory_space<vmem>>, vector<8x128xbf16>,
    %c8_75 = arith.constant 8 : index
    %c0_76 = arith.constant 0 : index
    %234 = vector.load %arg9[%c8_75, %c0_76] : memref<16x128xf32, #tpu.memory_space<vmem>>, vector<8x128xf32>
    tpu.vector_store %arg9[%c8_75, %c0_76], %227 {strides = array<i32>} : memref<16x128xf32, #tpu.memory_space<vmem>>, vector<8x128xf32>,
    %c2_i32 = arith.constant 2 : i32
    %235 = arith.cmpi eq, %arg1, %c2_i32 : i32
    %236 = arith.extui %235 : i1 to i32
    %c0_i32_77 = arith.constant 0 : i32
    %237 = arith.cmpi ne, %236, %c0_i32_77 : i32
    scf.if %237 {
      %c0_78 = arith.constant 0 : index
      %c0_79 = arith.constant 0 : index
      %238 = vector.load %arg8[%c0_78, %c0_79] : memref<16x128xbf16, #tpu.memory_space<vmem>>, vector<16x128xbf16>
      %c0_80 = arith.constant 0 : index
      %c0_81 = arith.constant 0 : index
      %239 = vector.load %arg5[%c0_80, %c0_81] : memref<128x128xbf16, #tpu.memory_space<vmem>>, vector<128x128xbf16>
      %cst_82 = arith.constant dense<0.000000e+00> : vector<16x128xf32>
      %240 = tpu.matmul %238, %239, %cst_82 {dimension_numbers = #tpu.dot_dimension_numbers<[1], [0], [0], [1], [0, 0, 1, 1], [], []>} : vector<16x128xbf16>, vector<128x128xbf16>, vector<16x128xf32> -> vector<16x128xf32>
      %c0_83 = arith.constant 0 : index
      %c0_84 = arith.constant 0 : index
      %241 = vector.load %arg6[%c0_83, %c0_84] : memref<1x128xf32, #tpu.memory_space<vmem>>, vector<1x128xf32>
      %242 = vector.broadcast %241 : vector<1x128xf32> to vector<16x128xf32>
      %243 = arith.addf %240, %242 : vector<16x128xf32>
      %c0_85 = arith.constant 0 : index
      %c0_86 = arith.constant 0 : index
      %244 = vector.load %arg7[%c0_85, %c0_86] : memref<16x128xf32, #tpu.memory_space<vmem>>, vector<16x128xf32>
      tpu.vector_store %arg7[%c0_85, %c0_86], %243 {strides = array<i32>} : memref<16x128xf32, #tpu.memory_space<vmem>>, vector<16x128xf32>,
    } else {
    }
    return
  }
  func.func @transform_0(%arg0: i32, %arg1: i32) -> (i32, i32, i32) {
    %c2_i32 = arith.constant 2 : i32
    %0 = arith.subi %c2_i32, %arg1 : i32
    %c0_i32 = arith.constant 0 : i32
    %c0_i32_0 = arith.constant 0 : i32
    return %0, %arg0, %c0_i32 : i32, i32, i32
  }
  func.func @transform_1(%arg0: i32, %arg1: i32) -> (i32, i32) {
    %c0_i32 = arith.constant 0 : i32
    %c0_i32_0 = arith.constant 0 : i32
    %c0_i32_1 = arith.constant 0 : i32
    return %c0_i32, %c0_i32_0 : i32, i32
  }
  func.func @transform_2(%arg0: i32, %arg1: i32) -> (i32, i32) {
    %c0_i32 = arith.constant 0 : i32
    %c0_i32_0 = arith.constant 0 : i32
    %c0_i32_1 = arith.constant 0 : i32
    return %c0_i32, %c0_i32_0 : i32, i32
  }
  func.func @transform_3(%arg0: i32, %arg1: i32) -> (i32, i32) {
    %c0_i32 = arith.constant 0 : i32
    %c0_i32_0 = arith.constant 0 : i32
    %c0_i32_1 = arith.constant 0 : i32
    return %c0_i32, %c0_i32_0 : i32, i32
  }
  func.func @transform_4(%arg0: i32, %arg1: i32) -> (i32, i32) {
    %c0_i32 = arith.constant 0 : i32
    %c0_i32_0 = arith.constant 0 : i32
    %c0_i32_1 = arith.constant 0 : i32
    return %c0_i32, %c0_i32_0 : i32, i32
  }
  func.func @transform_5(%arg0: i32, %arg1: i32) -> (i32, i32) {
    %c0_i32 = arith.constant 0 : i32
    %c0_i32_0 = arith.constant 0 : i32
    return %arg0, %c0_i32 : i32, i32
  }
}

</mosaic_0001>

<llo_original>
// kernel: rnn_encoder_forward.1
$region0: #{rnn_encoder_forward.1}
  #allocation0 [shape = 'u32[]', space=smem, size = 0x4, offset = 0x4, fixed_abs, tag = 'smem constant byte address 0x4 - core index']
  #allocation1 [shape = 'u32[144,128]{1,0:T(1,128)}', space=vmem, size = 0x12000, scoped, tag = 'internal scratch']
  #allocation2 [shape = 'bf16[16,128]{1,0:T(8,128)(2,1)}', space=vmem, size = 0x1000, scoped, tag = 'scratch operand']
  #allocation3 [shape = 'f32[16,128]{1,0:T(8,128)}', space=vmem, size = 0x2000, scoped, tag = 'scratch operand']
  #allocation4 [shape = 'bf16[3,16,512]{2,1,0:T(8,128)(2,1)}', space=vmem, size = 0xc000, scoped, tag = 'scratch operand']
  %s0 = inlined_call_operand.vmem [shape: s32[9,16,1], index: 0, kind: input, shape index: {}]
  %s1 = inlined_call_operand.vmem [shape: bf16[128,512], index: 1, kind: input, shape index: {}]
  %s2 = inlined_call_operand.vmem [shape: bf16[128,512], index: 2, kind: input, shape index: {}]
  %s3 = inlined_call_operand.vmem [shape: bf16[128,128], index: 3, kind: input, shape index: {}]
  %s4 = inlined_call_operand.vmem [shape: f32[1,128], index: 4, kind: input, shape index: {}]
  %s5 = inlined_call_operand.vmem [shape: f32[16,128], index: 5, kind: output, shape index: {}]
  %s6 = sld [smem:[#allocation0]]
  $region61: #{rnn_encoder_forward.1} parent=0
    _
  %s8 = ssub.s32 1, %s6
  %s9 = scalar_select 0, %s8, %s6
  loop: start=0, step=1, limit=5
  $region2: #{rnn_encoder_forward.1} parent=0 // loop_pre_header
    _
  $region3: #{rnn_encoder_forward.1} parent=0 // loop_header
    %s11 = sphi 0, %s15
    %p12 = scmp.ge.s32.totalorder %s11, 5
    %s18 = sphi 0, %s30
    %s19 = sphi 0, %s26
    %s20 = sphi 0, %s18
    %s21 = sphi 0, %s19
    %s22 = sphi 0, %s20
    %s23 = sphi 0, %s21
    %s37 = sphi 0, %s39
    %s40 = sphi 0, %s37
    %s41 = sphi 0, %s40
    %s57 = sphi 0, %s41
    %s61 = sphi 0, %s61
    %s63 = sphi 0, %s61
    %s64 = sphi 0, %s63
    %s78 = sphi 0, %s64
    %s82 = sphi 0, %s82
    %s84 = sphi 0, %s82
    %s85 = sphi 0, %s84
    %s99 = sphi 0, %s85
    %s103 = sphi 0, %s103
    %s105 = sphi 0, %s103
    %s106 = sphi 0, %s105
    %s120 = sphi 0, %s106
    %s124 = sphi 0, %s124
    %s126 = sphi 0, %s124
    %s127 = sphi 0, %s126
    %s141 = sphi 0, %s127
    %s147 = sphi 0, %s149
    %s150 = sphi 0, %s147
    %s151 = sphi 0, %s150
    %s167 = sphi 0, %s151
  $region4: #{rnn_encoder_forward.1} parent=0 // loop_header_branch
    %14 = sbr.rel (%p12) target = $region8
  $region5: #{rnn_encoder_forward.1} parent=0 // loop_body
    %s16 = ssub.s32 %s11, 1
    %s17 = ssub.s32 %s11, 2
    %s24 = sadd.s32 1, %s19
    %p25 = scmp.ge.s32.totalorder %s24, 3
    %s26 = scalar_select %p25, 0, %s24
    %s27 = sadd.s32 1, %s18
    %s28 = scalar_select %p25, %s27, %s18
    %p29 = scmp.ge.s32.totalorder %s28, 1
    %s30 = scalar_select %p29, 0, %s28
    %s31 = ssub.s32 2, %s19
    %s32 = ssub.s32 2, %s26
    %s33 = ssub.s32 %s31, %s32
    %s34 = ssub.s32 %s18, %s30
    %s35 = sor.u32 %s33, %s34
    %p36 = scmp.eq.s32.totalorder %s35, 0
    %s38 = sadd.s32 %s37, 1
    %s39 = scalar_select %p36, %s37, %s38
    %p42 = pneg %p36
    %p43 = scmp.eq.s32.totalorder %s11, 2
    %p44 = por %p42, %p43
    %p45 = scmp.ne.s32.totalorder %s37, %s40
    %p46 = scmp.eq.s32.totalorder %s11, 0
    %p47 = por %p45, %p46
    %p48 = scmp.ne.s32.totalorder %s37, %s40
    %p49 = scmp.eq.s32.totalorder %s16, 2
    %p50 = por %p48, %p49
    %p51 = scmp.ne.s32.totalorder %s40, %s41
    %p52 = scmp.eq.s32.totalorder %s16, 0
    %p53 = por %p51, %p52
    %p54 = scmp.ne.s32.totalorder %s40, %s41
    %p55 = scmp.eq.s32.totalorder %s17, 2
    %p56 = por %p54, %p55
    %p58 = scmp.ne.s32.totalorder %s41, %s57
    %p59 = scmp.eq.s32.totalorder %s17, 0
    %p60 = por %p58, %p59
    %s62 = sadd.s32 %s61, 1
    %p65 = scmp.eq.s32.totalorder %s11, 2
    %p66 = scmp.ne.s32.totalorder %s61, %s63
    %p67 = scmp.eq.s32.totalorder %s11, 0
    %p68 = por %p66, %p67
    %p69 = scmp.ne.s32.totalorder %s61, %s63
    %p70 = scmp.eq.s32.totalorder %s16, 2
    %p71 = por %p69, %p70
    %p72 = scmp.ne.s32.totalorder %s63, %s64
    %p73 = scmp.eq.s32.totalorder %s16, 0
    %p74 = por %p72, %p73
    %p75 = scmp.ne.s32.totalorder %s63, %s64
    %p76 = scmp.eq.s32.totalorder %s17, 2
    %p77 = por %p75, %p76
    %p79 = scmp.ne.s32.totalorder %s64, %s78
    %p80 = scmp.eq.s32.totalorder %s17, 0
    %p81 = por %p79, %p80
    %s83 = sadd.s32 %s82, 1
    %p86 = scmp.eq.s32.totalorder %s11, 2
    %p87 = scmp.ne.s32.totalorder %s82, %s84
    %p88 = scmp.eq.s32.totalorder %s11, 0
    %p89 = por %p87, %p88
    %p90 = scmp.ne.s32.totalorder %s82, %s84
    %p91 = scmp.eq.s32.totalorder %s16, 2
    %p92 = por %p90, %p91
    %p93 = scmp.ne.s32.totalorder %s84, %s85
    %p94 = scmp.eq.s32.totalorder %s16, 0
    %p95 = por %p93, %p94
    %p96 = scmp.ne.s32.totalorder %s84, %s85
    %p97 = scmp.eq.s32.totalorder %s17, 2
    %p98 = por %p96, %p97
    %p100 = scmp.ne.s32.totalorder %s85, %s99
    %p101 = scmp.eq.s32.totalorder %s17, 0
    %p102 = por %p100, %p101
    %s104 = sadd.s32 %s103, 1
    %p107 = scmp.eq.s32.totalorder %s11, 2
    %p108 = scmp.ne.s32.totalorder %s103, %s105
    %p109 = scmp.eq.s32.totalorder %s11, 0
    %p110 = por %p108, %p109
    %p111 = scmp.ne.s32.totalorder %s103, %s105
    %p112 = scmp.eq.s32.totalorder %s16, 2
    %p113 = por %p111, %p112
    %p114 = scmp.ne.s32.totalorder %s105, %s106
    %p115 = scmp.eq.s32.totalorder %s16, 0
    %p116 = por %p114, %p115
    %p117 = scmp.ne.s32.totalorder %s105, %s106
    %p118 = scmp.eq.s32.totalorder %s17, 2
    %p119 = por %p117, %p118
    %p121 = scmp.ne.s32.totalorder %s106, %s120
    %p122 = scmp.eq.s32.totalorder %s17, 0
    %p123 = por %p121, %p122
    %s125 = sadd.s32 %s124, 1
    %p128 = scmp.eq.s32.totalorder %s11, 2
    %p129 = scmp.ne.s32.totalorder %s124, %s126
    %p130 = scmp.eq.s32.totalorder %s11, 0
    %p131 = por %p129, %p130
    %p132 = scmp.ne.s32.totalorder %s124, %s126
    %p133 = scmp.eq.s32.totalorder %s16, 2
    %p134 = por %p132, %p133
    %p135 = scmp.ne.s32.totalorder %s126, %s127
    %p136 = scmp.eq.s32.totalorder %s16, 0
    %p137 = por %p135, %p136
    %p138 = scmp.ne.s32.totalorder %s126, %s127
    %p139 = scmp.eq.s32.totalorder %s17, 2
    %p140 = por %p138, %p139
    %p142 = scmp.ne.s32.totalorder %s127, %s141
    %p143 = scmp.eq.s32.totalorder %s17, 0
    %p144 = por %p142, %p143
    %s145 = ssub.s32 %s18, %s30
    %p146 = scmp.eq.s32.totalorder %s145, 0
    %s148 = sadd.s32 %s147, 1
    %s149 = scalar_select %p146, %s147, %s148
    %p152 = pneg %p146
    %p153 = scmp.eq.s32.totalorder %s11, 2
    %p154 = por %p152, %p153
    %p155 = scmp.ne.s32.totalorder %s147, %s150
    %p156 = scmp.eq.s32.totalorder %s11, 0
    %p157 = por %p155, %p156
    %p158 = scmp.ne.s32.totalorder %s147, %s150
    %p159 = scmp.eq.s32.totalorder %s16, 2
    %p160 = por %p158, %p159
    %p161 = scmp.ne.s32.totalorder %s150, %s151
    %p162 = scmp.eq.s32.totalorder %s16, 0
    %p163 = por %p161, %p162
    %p164 = scmp.ne.s32.totalorder %s150, %s151
    %p165 = scmp.eq.s32.totalorder %s17, 2
    %p166 = por %p164, %p165
    %p168 = scmp.ne.s32.totalorder %s151, %s167
    %p169 = scmp.eq.s32.totalorder %s17, 0
    %p170 = por %p168, %p169
    %p171 = scmp.le.s32.totalorder 1, %s11
    %p172 = scmp.lt.s32.totalorder %s11, 4
    %p173 = pnand %p171, %p172
    %p174 = pneg %p173
    // Predicated region
    $region9: #{rnn_encoder_forward.1} parent=5 // pred_check
      _
    $region10: #{rnn_encoder_forward.1} parent=5 // pred_check_branch
      %176 = sbr.rel (%p173) target = $region12
    $region11: #{rnn_encoder_forward.1} parent=5 // pred_region
      %s177 = ssub.s32 %s11, 1
      // Predicated region
      $region13: #{rnn_encoder_forward.1} parent=11 // pred_check
        %p178 = pneg %p74
      $region14: #{rnn_encoder_forward.1} parent=11 // pred_check_branch
        %180 = sbr.rel (%p178) target = $region16
      $region15: #{rnn_encoder_forward.1} parent=11 // pred_region
        _
      $region16: #{rnn_encoder_forward.1} parent=11 // pred_fallthru
        _
      // Predicated region
      $region17: #{rnn_encoder_forward.1} parent=11 // pred_check
        %p181 = pneg %p95
      $region18: #{rnn_encoder_forward.1} parent=11 // pred_check_branch
        %183 = sbr.rel (%p181) target = $region20
      $region19: #{rnn_encoder_forward.1} parent=11 // pred_region
        _
      $region20: #{rnn_encoder_forward.1} parent=11 // pred_fallthru
        _
      // Predicated region
      $region21: #{rnn_encoder_forward.1} parent=11 // pred_check
        %p184 = pneg %p116
      $region22: #{rnn_encoder_forward.1} parent=11 // pred_check_branch
        %186 = sbr.rel (%p184) target = $region24
      $region23: #{rnn_encoder_forward.1} parent=11 // pred_region
        _
      $region24: #{rnn_encoder_forward.1} parent=11 // pred_fallthru
        _
      // Predicated region
      $region25: #{rnn_encoder_forward.1} parent=11 // pred_check
        %p187 = pneg %p137
      $region26: #{rnn_encoder_forward.1} parent=11 // pred_check_branch
        %189 = sbr.rel (%p187) target = $region28
      $region27: #{rnn_encoder_forward.1} parent=11 // pred_region
        _
      $region28: #{rnn_encoder_forward.1} parent=11 // pred_fallthru
        _
    $region12: #{rnn_encoder_forward.1} parent=5 // pred_fallthru
      _
    %p190 = scmp.lt.s32.totalorder %s11, 3
    // Predicated region
    $region29: #{rnn_encoder_forward.1} parent=5 // pred_check
      %p191 = pneg %p190
    $region30: #{rnn_encoder_forward.1} parent=5 // pred_check_branch
      %193 = sbr.rel (%p191) target = $region32
    $region31: #{rnn_encoder_forward.1} parent=5 // pred_region
      // Predicated region
      $region33: #{rnn_encoder_forward.1} parent=31 // pred_check
        %p194 = pneg %p47
      $region34: #{rnn_encoder_forward.1} parent=31 // pred_check_branch
        %196 = sbr.rel (%p194) target = $region36
      $region35: #{rnn_encoder_forward.1} parent=31 // pred_region
        %s197 = ssub.s32 2, %s19
        %s198 = smul.u32 3, %s197
        %s199 = smul.u32 2, %s18
        %p200 = scmp.lt.s32.totalorder %s198, 8
        %s201 = scalar_select %p200, %s198, 8
        %p202 = scmp.lt.s32.totalorder %s199, 1
        %s203 = scalar_select %p202, %s199, 1
        %s204 = smul.addr %s201, 2
        %s205 = sadd.s32 %s203, %s204
        %s206 = smul.addr %s205, 8
        %s207 = scalar_lea.vmem %s0, %s206
        %s208 = ssub.s32 2, %s19
        %s209 = smul.u32 3, %s208
        %s210 = smul.u32 2, %s18
      $region36: #{rnn_encoder_forward.1} parent=31 // pred_fallthru
        _
    $region32: #{rnn_encoder_forward.1} parent=5 // pred_fallthru
      _
    %p211 = scmp.le.s32.totalorder 1, %s11
    %p212 = scmp.lt.s32.totalorder %s11, 4
    %p213 = pnand %p211, %p212
    %p214 = pneg %p213
    // Predicated region
    $region37: #{rnn_encoder_forward.1} parent=5 // pred_check
      _
    $region38: #{rnn_encoder_forward.1} parent=5 // pred_check_branch
      %216 = sbr.rel (%p213) target = $region40
    $region39: #{rnn_encoder_forward.1} parent=5 // pred_region
      %s217 = ssub.s32 %s11, 1
      %s218 = ssub.s32 2, %s21
      %s219 = smul.u32 3, %s218
      %s220 = smul.u32 2, %s20
      %p221 = scmp.lt.s32.totalorder %s219, 8
      %s222 = scalar_select %p221, %s219, 8
      %p223 = scmp.lt.s32.totalorder %s220, 1
      %s224 = scalar_select %p223, %s220, 1
      %s225 = smul.addr %s222, 2
      %s226 = sadd.s32 %s224, %s225
      %s227 = smul.addr %s226, 8
      %s228 = scalar_lea.vmem %s0, %s227
      %p229 = pneg %p53
      %p230 = pneg %p50
      %p231 = pneg %p74
      %p232 = pneg %p71
      %p233 = pneg %p95
      %p234 = pneg %p92
      %p235 = pneg %p116
      %p236 = pneg %p113
      %p237 = pneg %p137
      %p238 = pneg %p134
      %p239 = pneg %p163
      %p240 = pneg %p160
      %s241 = smul.u32 2, %s20
      %p242 = scmp.lt.s32.totalorder %s241, 1
      %s243 = scalar_select %p242, %s241, 1
      %s244 = smul.addr %s243, 8
      %s245 = scalar_lea.vmem %s5, %s244
      %s246 = ssub.s32 2, %s21
      %s247 = smul.u32 3, %s246
      %s248 = smul.u32 2, %s20
      %p249 = scmp.lt.s32.totalorder %s247, 8
      %s250 = scalar_select %p249, %s247, 8
      %p251 = scmp.lt.s32.totalorder %s248, 1
      %s252 = scalar_select %p251, %s248, 1
      %s253 = smul.addr %s250, 2
      %s254 = sadd.s32 %s252, %s253
      %s255 = smul.addr %s254, 8
      %s256 = scalar_lea.vmem %s0, %s255
      %s257 = ssub.s32 2, %s21
      %s258 = smul.u32 3, %s257
      %s259 = smul.u32 2, %s20
      %s260 = smul.u32 2, %s20
      %p261 = scmp.lt.s32.totalorder %s260, 1
      %s262 = scalar_select %p261, %s260, 1
      %s263 = smul.addr %s262, 8
      %s264 = scalar_lea.vmem %s5, %s263
      %s265 = smul.u32 2, %s20
      %p268 = scmp.eq.s32.totalorder %s21, 0
      // Predicated region
      $region41: #{rnn_encoder_forward.1} parent=39 // pred_check
        %p269 = pneg %p268
      $region42: #{rnn_encoder_forward.1} parent=39 // pred_check_branch
        %271 = sbr.rel (%p269) target = $region44
      $region43: #{rnn_encoder_forward.1} parent=39 // pred_region
        %272 = vst [vmem:[#allocation2] sm:$0xf] 0
        %273 = vst [vmem:[#allocation2 + $0x4] sm:$0xf] 0
        %274 = vst [vmem:[#allocation3] sm:$0xff] 0.0
        %275 = vst [vmem:[#allocation3 + $0x8] sm:$0xff] 0.0
      $region44: #{rnn_encoder_forward.1} parent=39 // pred_fallthru
        _
      %v276 = vld [vmem:[%s256] sm:$0xff]
      %v277 = vld [vmem:[%s256 + $0x8] sm:$0xff]
      %v278 = vld [vmem:[%s256 + $0x10] sm:$0xff]
      %v279 = vld [vmem:[%s256 + $0x18] sm:$0xff]
      %v280 = vld [vmem:[%s256 + $0x20] sm:$0xff]
      %v281 = vld [vmem:[%s256 + $0x28] sm:$0xff]
      %v282 = vlaneseq
      %v283 = vand.u32 %v282, 127
      %284 = vset.pattern.permute.xlu0 0
      %285 = vperm.xlu0 %284, %v276
      %v286 = vpop.permute.xlu0 %285
      %287 = vset.pattern.permute.xlu0 0
      %288 = vperm.xlu0 %287, %v277
      %v289 = vpop.permute.xlu0 %288
      %290 = vset.pattern.permute.xlu0 0
      %291 = vperm.xlu0 %290, %v278
      %v292 = vpop.permute.xlu0 %291
      %293 = vset.pattern.permute.xlu0 0
      %294 = vperm.xlu0 %293, %v279
      %v295 = vpop.permute.xlu0 %294
      %296 = vset.pattern.permute.xlu0 0
      %297 = vperm.xlu0 %296, %v280
      %v298 = vpop.permute.xlu0 %297
      %299 = vset.pattern.permute.xlu0 0
      %300 = vperm.xlu0 %299, %v281
      %v301 = vpop.permute.xlu0 %300
      %vm302 = vcmp.eq.s32.totalorder %v286, %v283
      %vm303 = vcmp.eq.s32.totalorder %v289, %v283
      %vm304 = vcmp.eq.s32.totalorder %v292, %v283
      %vm305 = vcmp.eq.s32.totalorder %v295, %v283
      %vm306 = vcmp.eq.s32.totalorder %v298, %v283
      %vm307 = vcmp.eq.s32.totalorder %v301, %v283
      %v308 = vsel %vm302, 1.0, 0.0
      %v309 = vsel %vm303, 1.0, 0.0
      %v310 = vsel %vm304, 1.0, 0.0
      %v311 = vsel %vm305, 1.0, 0.0
      %v312 = vsel %vm306, 1.0, 0.0
      %v313 = vsel %vm307, 1.0, 0.0
      %v314 = vpack.c.bf16 %v309, %v308
      %v315 = vpack.c.bf16 %v311, %v310
      %v316 = vpack.c.bf16 %v313, %v312
      %v317 = vld [vmem:[%s1] sm:$0xff]
      %v318 = vld [vmem:[%s1 + $0x8] sm:$0xff]
      %v319 = vld [vmem:[%s1 + $0x10] sm:$0xff]
      %v320 = vld [vmem:[%s1 + $0x18] sm:$0xff]
      %v321 = vld [vmem:[%s1 + $0x20] sm:$0xff]
      %v322 = vld [vmem:[%s1 + $0x28] sm:$0xff]
      %v323 = vld [vmem:[%s1 + $0x30] sm:$0xff]
      %v324 = vld [vmem:[%s1 + $0x38] sm:$0xff]
      %v325 = vld [vmem:[%s1 + $0x40] sm:$0xff]
      %v326 = vld [vmem:[%s1 + $0x48] sm:$0xff]
      %v327 = vld [vmem:[%s1 + $0x50] sm:$0xff]
      %v328 = vld [vmem:[%s1 + $0x58] sm:$0xff]
      %v329 = vld [vmem:[%s1 + $0x60] sm:$0xff]
      %v330 = vld [vmem:[%s1 + $0x68] sm:$0xff]
      %v331 = vld [vmem:[%s1 + $0x70] sm:$0xff]
      %v332 = vld [vmem:[%s1 + $0x78] sm:$0xff]
      %v333 = vld [vmem:[%s1 + $0x80] sm:$0xff]
      %v334 = vld [vmem:[%s1 + $0x88] sm:$0xff]
      %v335 = vld [vmem:[%s1 + $0x90] sm:$0xff]
      %v336 = vld [vmem:[%s1 + $0x98] sm:$0xff]
      %v337 = vld [vmem:[%s1 + $0xa0] sm:$0xff]
      %v338 = vld [vmem:[%s1 + $0xa8] sm:$0xff]
      %v339 = vld [vmem:[%s1 + $0xb0] sm:$0xff]
      %v340 = vld [vmem:[%s1 + $0xb8] sm:$0xff]
      %v341 = vld [vmem:[%s1 + $0xc0] sm:$0xff]
      %v342 = vld [vmem:[%s1 + $0xc8] sm:$0xff]
      %v343 = vld [vmem:[%s1 + $0xd0] sm:$0xff]
      %v344 = vld [vmem:[%s1 + $0xd8] sm:$0xff]
      %v345 = vld [vmem:[%s1 + $0xe0] sm:$0xff]
      %v346 = vld [vmem:[%s1 + $0xe8] sm:$0xff]
      %v347 = vld [vmem:[%s1 + $0xf0] sm:$0xff]
      %v348 = vld [vmem:[%s1 + $0xf8] sm:$0xff]
      %v381 = vunpack.c.l.b16 %v317
      %v382 = vunpack.c.h.b16 %v317
      %v383 = vunpack.c.l.b16 %v318
      %v384 = vunpack.c.h.b16 %v318
      %v385 = vunpack.c.l.b16 %v319
      %v386 = vunpack.c.h.b16 %v319
      %v387 = vunpack.c.l.b16 %v320
      %v388 = vunpack.c.h.b16 %v320
      %v389 = vunpack.c.l.b16 %v321
      %v390 = vunpack.c.h.b16 %v321
      %v391 = vunpack.c.l.b16 %v322
      %v392 = vunpack.c.h.b16 %v322
      %v393 = vunpack.c.l.b16 %v323
      %v394 = vunpack.c.h.b16 %v323
      %v395 = vunpack.c.l.b16 %v324
      %v396 = vunpack.c.h.b16 %v324
      %v397 = vunpack.c.l.b16 %v325
      %v398 = vunpack.c.h.b16 %v325
      %v399 = vunpack.c.l.b16 %v326
      %v400 = vunpack.c.h.b16 %v326
      %v401 = vunpack.c.l.b16 %v327
      %v402 = vunpack.c.h.b16 %v327
      %v403 = vunpack.c.l.b16 %v328
      %v404 = vunpack.c.h.b16 %v328
      %v405 = vunpack.c.l.b16 %v329
      %v406 = vunpack.c.h.b16 %v329
      %v407 = vunpack.c.l.b16 %v330
      %v408 = vunpack.c.h.b16 %v330
      %v409 = vunpack.c.l.b16 %v331
      %v410 = vunpack.c.h.b16 %v331
      %v411 = vunpack.c.l.b16 %v332
      %v412 = vunpack.c.h.b16 %v332
      %v413 = vunpack.c.l.b16 %v333
      %v414 = vunpack.c.h.b16 %v333
      %v415 = vunpack.c.l.b16 %v334
      %v416 = vunpack.c.h.b16 %v334
      %v417 = vunpack.c.l.b16 %v335
      %v418 = vunpack.c.h.b16 %v335
      %v419 = vunpack.c.l.b16 %v336
      %v420 = vunpack.c.h.b16 %v336
      %v421 = vunpack.c.l.b16 %v337
      %v422 = vunpack.c.h.b16 %v337
      %v423 = vunpack.c.l.b16 %v338
      %v424 = vunpack.c.h.b16 %v338
      %v425 = vunpack.c.l.b16 %v339
      %v426 = vunpack.c.h.b16 %v339
      %v427 = vunpack.c.l.b16 %v340
      %v428 = vunpack.c.h.b16 %v340
      %v429 = vunpack.c.l.b16 %v341
      %v430 = vunpack.c.h.b16 %v341
      %v431 = vunpack.c.l.b16 %v342
      %v432 = vunpack.c.h.b16 %v342
      %v433 = vunpack.c.l.b16 %v343
      %v434 = vunpack.c.h.b16 %v343
      %v435 = vunpack.c.l.b16 %v344
      %v436 = vunpack.c.h.b16 %v344
      %v437 = vunpack.c.l.b16 %v345
      %v438 = vunpack.c.h.b16 %v345
      %v439 = vunpack.c.l.b16 %v346
      %v440 = vunpack.c.h.b16 %v346
      %v441 = vunpack.c.l.b16 %v347
      %v442 = vunpack.c.h.b16 %v347
      %v443 = vunpack.c.l.b16 %v348
      %v444 = vunpack.c.h.b16 %v348
      %v445 = vpack.c.b16 %v385, %v381
      %v446 = vpack.c.b16 %v386, %v382
      %v447 = vpack.c.b16 %v387, %v383
      %v448 = vpack.c.b16 %v388, %v384
      %v449 = vpack.c.b16 %v393, %v389
      %v450 = vpack.c.b16 %v394, %v390
      %v451 = vpack.c.b16 %v395, %v391
      %v452 = vpack.c.b16 %v396, %v392
      %v453 = vpack.c.b16 %v401, %v397
      %v454 = vpack.c.b16 %v402, %v398
      %v455 = vpack.c.b16 %v403, %v399
      %v456 = vpack.c.b16 %v404, %v400
      %v457 = vpack.c.b16 %v409, %v405
      %v458 = vpack.c.b16 %v410, %v406
      %v459 = vpack.c.b16 %v411, %v407
      %v460 = vpack.c.b16 %v412, %v408
      %v461 = vpack.c.b16 %v417, %v413
      %v462 = vpack.c.b16 %v418, %v414
      %v463 = vpack.c.b16 %v419, %v415
      %v464 = vpack.c.b16 %v420, %v416
      %v465 = vpack.c.b16 %v425, %v421
      %v466 = vpack.c.b16 %v426, %v422
      %v467 = vpack.c.b16 %v427, %v423
      %v468 = vpack.c.b16 %v428, %v424
      %v469 = vpack.c.b16 %v433, %v429
      %v470 = vpack.c.b16 %v434, %v430
      %v471 = vpack.c.b16 %v435, %v431
      %v472 = vpack.c.b16 %v436, %v432
      %v473 = vpack.c.b16 %v441, %v437
      %v474 = vpack.c.b16 %v442, %v438
      %v475 = vpack.c.b16 %v443, %v439
      %v476 = vpack.c.b16 %v444, %v440
      %509 = vmatprep.subr.bf16.mxu0 %v474
      %510 = vmatpush1.bf16.msra.mxu0 %v473
      %511 = vmatprep.subr.bf16.mxu0 %v470
      %512 = vmatpush1.bf16.msra.mxu0 %v469
      %513 = vmatprep.subr.bf16.mxu0 %v466
      %514 = vmatpush1.bf16.msra.mxu0 %v465
      %515 = vmatprep.subr.bf16.mxu0 %v462
      %516 = vmatpush1.bf16.msra.mxu0 %v461
      %517 = vmatprep.subr.bf16.mxu0 %v458
      %518 = vmatpush1.bf16.msra.mxu0 %v457
      %519 = vmatprep.subr.bf16.mxu0 %v454
      %520 = vmatpush1.bf16.msra.mxu0 %v453
      %521 = vmatprep.subr.bf16.mxu0 %v450
      %522 = vmatpush1.bf16.msra.mxu0 %v449
      %523 = vmatprep.subr.bf16.mxu0 %v446
      %524 = vmatpush1.bf16.msra.mxu0 %v445
      %525 = vmatprep.subr.bf16.mxu0 0
      %526 = vmatpush2.bf16.msra.mxu0 0
      %527 = vmatprep.subr.bf16.mxu0 0
      %528 = vmatpush2.bf16.msra.mxu0 0
      %529 = vmatprep.subr.bf16.mxu0 0
      %530 = vmatpush2.bf16.msra.mxu0 0
      %531 = vmatprep.subr.bf16.mxu0 0
      %532 = vmatpush2.bf16.msra.mxu0 0
      %533 = vmatprep.subr.bf16.mxu0 0
      %534 = vmatpush2.bf16.msra.mxu0 0
      %535 = vmatprep.subr.bf16.mxu0 0
      %536 = vmatpush2.bf16.msra.mxu0 0
      %537 = vmatprep.subr.bf16.mxu0 0
      %538 = vmatpush2.bf16.msra.mxu0 0
      %539 = vmatprep.subr.bf16.mxu0 0
      %540 = vmatpush2.bf16.msra.mxu0 0
      %541 = vmatprep.mubr.bf16.mxu0 0
      %542 = vmatmul.mubr.bf16.gmra.mxu0 %v314
      %v543 = vpop.f32.mrf.mxu0
      %v544 = vadd.f32 0.0, %v543
      %v545 = vpop.f32.mrf.mxu0
      %v546 = vadd.f32 0.0, %v545
      %v547 = vpop.f32.mrf.mxu0
      %v548 = vadd.f32 0.0, %v547
      %v549 = vpop.f32.mrf.mxu0
      %v550 = vadd.f32 0.0, %v549
      %551 = vmatprep.mubr.bf16.mxu0 0
      %552 = vmatmul.mubr.bf16.gmra.mxu0 %v315
      %v553 = vpop.f32.mrf.mxu0
      %v554 = vadd.f32 0.0, %v553
      %v555 = vpop.f32.mrf.mxu0
      %v556 = vadd.f32 0.0, %v555
      %v557 = vpop.f32.mrf.mxu0
      %v558 = vadd.f32 0.0, %v557
      %v559 = vpop.f32.mrf.mxu0
      %v560 = vadd.f32 0.0, %v559
      %561 = vmatprep.mubr.bf16.mxu0 0
      %562 = vmatmul.mubr.bf16.gmra.mxu0 %v316
      %v563 = vpop.f32.mrf.mxu0
      %v564 = vadd.f32 0.0, %v563
      %v565 = vpop.f32.mrf.mxu0
      %v566 = vadd.f32 0.0, %v565
      %v567 = vpop.f32.mrf.mxu0
      %v568 = vadd.f32 0.0, %v567
      %v569 = vpop.f32.mrf.mxu0
      %v570 = vadd.f32 0.0, %v569
      %571 = vdwg.mxu0
      %572 = vmatprep.subr.bf16.mxu0 %v476
      %573 = vmatpush1.bf16.msra.mxu0 %v475
      %574 = vmatprep.subr.bf16.mxu0 %v472
      %575 = vmatpush1.bf16.msra.mxu0 %v471
      %576 = vmatprep.subr.bf16.mxu0 %v468
      %577 = vmatpush1.bf16.msra.mxu0 %v467
      %578 = vmatprep.subr.bf16.mxu0 %v464
      %579 = vmatpush1.bf16.msra.mxu0 %v463
      %580 = vmatprep.subr.bf16.mxu0 %v460
      %581 = vmatpush1.bf16.msra.mxu0 %v459
      %582 = vmatprep.subr.bf16.mxu0 %v456
      %583 = vmatpush1.bf16.msra.mxu0 %v455
      %584 = vmatprep.subr.bf16.mxu0 %v452
      %585 = vmatpush1.bf16.msra.mxu0 %v451
      %586 = vmatprep.subr.bf16.mxu0 %v448
      %587 = vmatpush1.bf16.msra.mxu0 %v447
      %588 = vmatprep.subr.bf16.mxu0 0
      %589 = vmatpush2.bf16.msra.mxu0 0
      %590 = vmatprep.subr.bf16.mxu0 0
      %591 = vmatpush2.bf16.msra.mxu0 0
      %592 = vmatprep.subr.bf16.mxu0 0
      %593 = vmatpush2.bf16.msra.mxu0 0
      %594 = vmatprep.subr.bf16.mxu0 0
      %595 = vmatpush2.bf16.msra.mxu0 0
      %596 = vmatprep.subr.bf16.mxu0 0
      %597 = vmatpush2.bf16.msra.mxu0 0
      %598 = vmatprep.subr.bf16.mxu0 0
      %599 = vmatpush2.bf16.msra.mxu0 0
      %600 = vmatprep.subr.bf16.mxu0 0
      %601 = vmatpush2.bf16.msra.mxu0 0
      %602 = vmatprep.subr.bf16.mxu0 0
      %603 = vmatpush2.bf16.msra.mxu0 0
      %604 = vmatprep.mubr.bf16.mxu0 0
      %605 = vmatmul.mubr.bf16.gmra.mxu0 %v314
      %v606 = vpop.f32.mrf.mxu0
      %v607 = vadd.f32 0.0, %v606
      %v608 = vpop.f32.mrf.mxu0
      %v609 = vadd.f32 0.0, %v608
      %v610 = vpop.f32.mrf.mxu0
      %v611 = vadd.f32 0.0, %v610
      %v612 = vpop.f32.mrf.mxu0
      %v613 = vadd.f32 0.0, %v612
      %614 = vmatprep.mubr.bf16.mxu0 0
      %615 = vmatmul.mubr.bf16.gmra.mxu0 %v315
      %v616 = vpop.f32.mrf.mxu0
      %v617 = vadd.f32 0.0, %v616
      %v618 = vpop.f32.mrf.mxu0
      %v619 = vadd.f32 0.0, %v618
      %v620 = vpop.f32.mrf.mxu0
      %v621 = vadd.f32 0.0, %v620
      %v622 = vpop.f32.mrf.mxu0
      %v623 = vadd.f32 0.0, %v622
      %624 = vmatprep.mubr.bf16.mxu0 0
      %625 = vmatmul.mubr.bf16.gmra.mxu0 %v316
      %v626 = vpop.f32.mrf.mxu0
      %v627 = vadd.f32 0.0, %v626
      %v628 = vpop.f32.mrf.mxu0
      %v629 = vadd.f32 0.0, %v628
      %v630 = vpop.f32.mrf.mxu0
      %v631 = vadd.f32 0.0, %v630
      %v632 = vpop.f32.mrf.mxu0
      %v633 = vadd.f32 0.0, %v632
      %634 = vdwg.mxu0
      %v635 = vpack.c.bf16 %v548, %v544
      %v636 = vpack.c.bf16 %v550, %v546
      %v637 = vpack.c.bf16 %v611, %v607
      %v638 = vpack.c.bf16 %v613, %v609
      %v639 = vpack.c.bf16 %v558, %v554
      %v640 = vpack.c.bf16 %v560, %v556
      %v641 = vpack.c.bf16 %v621, %v617
      %v642 = vpack.c.bf16 %v623, %v619
      %v643 = vpack.c.bf16 %v568, %v564
      %v644 = vpack.c.bf16 %v570, %v566
      %v645 = vpack.c.bf16 %v631, %v627
      %v646 = vpack.c.bf16 %v633, %v629
      %v659 = vunpack.c.l.b16 %v635
      %v660 = vunpack.c.l.b16 %v636
      %v661 = vunpack.c.l.b16 %v637
      %v662 = vunpack.c.l.b16 %v638
      %v663 = vunpack.c.h.b16 %v635
      %v664 = vunpack.c.h.b16 %v636
      %v665 = vunpack.c.h.b16 %v637
      %v666 = vunpack.c.h.b16 %v638
      %v667 = vunpack.c.l.b16 %v639
      %v668 = vunpack.c.l.b16 %v640
      %v669 = vunpack.c.l.b16 %v641
      %v670 = vunpack.c.l.b16 %v642
      %v671 = vunpack.c.h.b16 %v639
      %v672 = vunpack.c.h.b16 %v640
      %v673 = vunpack.c.h.b16 %v641
      %v674 = vunpack.c.h.b16 %v642
      %v675 = vunpack.c.l.b16 %v643
      %v676 = vunpack.c.l.b16 %v644
      %v677 = vunpack.c.l.b16 %v645
      %v678 = vunpack.c.l.b16 %v646
      %v679 = vunpack.c.h.b16 %v643
      %v680 = vunpack.c.h.b16 %v644
      %v681 = vunpack.c.h.b16 %v645
      %v682 = vunpack.c.h.b16 %v646
      %v683 = vpack.c.b16 %v660, %v659
      %v684 = vpack.c.b16 %v662, %v661
      %v685 = vpack.c.b16 %v664, %v663
      %v686 = vpack.c.b16 %v666, %v665
      %v687 = vpack.c.b16 %v668, %v667
      %v688 = vpack.c.b16 %v670, %v669
      %v689 = vpack.c.b16 %v672, %v671
      %v690 = vpack.c.b16 %v674, %v673
      %v691 = vpack.c.b16 %v676, %v675
      %v692 = vpack.c.b16 %v678, %v677
      %v693 = vpack.c.b16 %v680, %v679
      %v694 = vpack.c.b16 %v682, %v681
      %707 = vst [vmem:[#allocation4] sm:$0xff] %v683
      %708 = vst [vmem:[#allocation4 + $0x8] sm:$0xff] %v684
      %709 = vst [vmem:[#allocation4 + $0x10] sm:$0xff] %v685
      %710 = vst [vmem:[#allocation4 + $0x18] sm:$0xff] %v686
      %711 = vst [vmem:[#allocation4 + $0x20] sm:$0xff] %v687
      %712 = vst [vmem:[#allocation4 + $0x28] sm:$0xff] %v688
      %713 = vst [vmem:[#allocation4 + $0x30] sm:$0xff] %v689
      %714 = vst [vmem:[#allocation4 + $0x38] sm:$0xff] %v690
      %715 = vst [vmem:[#allocation4 + $0x40] sm:$0xff] %v691
      %716 = vst [vmem:[#allocation4 + $0x48] sm:$0xff] %v692
      %717 = vst [vmem:[#allocation4 + $0x50] sm:$0xff] %v693
      %718 = vst [vmem:[#allocation4 + $0x58] sm:$0xff] %v694
      %v719 = vld [vmem:[#allocation2] sm:$0xf]
      %v720 = vld [vmem:[#allocation2 + $0x4] sm:$0xf]
      %v721 = vld [vmem:[#allocation3] sm:$0xff]
      %v722 = vld [vmem:[#allocation3 + $0x8] sm:$0xff]
      %s723 = scalar_lea.vmem [#allocation4], 64
      %v724 = vld [vmem:[%s723] sm:$0xff]
      %v725 = vld [vmem:[%s723 + $0x8] sm:$0xff]
      %v726 = vld [vmem:[%s2] sm:$0xff]
      %v727 = vld [vmem:[%s2 + $0x8] sm:$0xff]
      %v728 = vld [vmem:[%s2 + $0x10] sm:$0xff]
      %v729 = vld [vmem:[%s2 + $0x18] sm:$0xff]
      %v730 = vld [vmem:[%s2 + $0x20] sm:$0xff]
      %v731 = vld [vmem:[%s2 + $0x28] sm:$0xff]
      %v732 = vld [vmem:[%s2 + $0x30] sm:$0xff]
      %v733 = vld [vmem:[%s2 + $0x38] sm:$0xff]
      %v734 = vld [vmem:[%s2 + $0x40] sm:$0xff]
      %v735 = vld [vmem:[%s2 + $0x48] sm:$0xff]
      %v736 = vld [vmem:[%s2 + $0x50] sm:$0xff]
      %v737 = vld [vmem:[%s2 + $0x58] sm:$0xff]
      %v738 = vld [vmem:[%s2 + $0x60] sm:$0xff]
      %v739 = vld [vmem:[%s2 + $0x68] sm:$0xff]
      %v740 = vld [vmem:[%s2 + $0x70] sm:$0xff]
      %v741 = vld [vmem:[%s2 + $0x78] sm:$0xff]
      %v742 = vld [vmem:[%s2 + $0x80] sm:$0xff]
      %v743 = vld [vmem:[%s2 + $0x88] sm:$0xff]
      %v744 = vld [vmem:[%s2 + $0x90] sm:$0xff]
      %v745 = vld [vmem:[%s2 + $0x98] sm:$0xff]
      %v746 = vld [vmem:[%s2 + $0xa0] sm:$0xff]
      %v747 = vld [vmem:[%s2 + $0xa8] sm:$0xff]
      %v748 = vld [vmem:[%s2 + $0xb0] sm:$0xff]
      %v749 = vld [vmem:[%s2 + $0xb8] sm:$0xff]
      %v750 = vld [vmem:[%s2 + $0xc0] sm:$0xff]
      %v751 = vld [vmem:[%s2 + $0xc8] sm:$0xff]
      %v752 = vld [vmem:[%s2 + $0xd0] sm:$0xff]
      %v753 = vld [vmem:[%s2 + $0xd8] sm:$0xff]
      %v754 = vld [vmem:[%s2 + $0xe0] sm:$0xff]
      %v755 = vld [vmem:[%s2 + $0xe8] sm:$0xff]
      %v756 = vld [vmem:[%s2 + $0xf0] sm:$0xff]
      %v757 = vld [vmem:[%s2 + $0xf8] sm:$0xff]
      %v790 = vunpack.c.l.b16 %v726
      %v791 = vunpack.c.h.b16 %v726
      %v792 = vunpack.c.l.b16 %v727
      %v793 = vunpack.c.h.b16 %v727
      %v794 = vunpack.c.l.b16 %v728
      %v795 = vunpack.c.h.b16 %v728
      %v796 = vunpack.c.l.b16 %v729
      %v797 = vunpack.c.h.b16 %v729
      %v798 = vunpack.c.l.b16 %v730
      %v799 = vunpack.c.h.b16 %v730
      %v800 = vunpack.c.l.b16 %v731
      %v801 = vunpack.c.h.b16 %v731
      %v802 = vunpack.c.l.b16 %v732
      %v803 = vunpack.c.h.b16 %v732
      %v804 = vunpack.c.l.b16 %v733
      %v805 = vunpack.c.h.b16 %v733
      %v806 = vunpack.c.l.b16 %v734
      %v807 = vunpack.c.h.b16 %v734
      %v808 = vunpack.c.l.b16 %v735
      %v809 = vunpack.c.h.b16 %v735
      %v810 = vunpack.c.l.b16 %v736
      %v811 = vunpack.c.h.b16 %v736
      %v812 = vunpack.c.l.b16 %v737
      %v813 = vunpack.c.h.b16 %v737
      %v814 = vunpack.c.l.b16 %v738
      %v815 = vunpack.c.h.b16 %v738
      %v816 = vunpack.c.l.b16 %v739
      %v817 = vunpack.c.h.b16 %v739
      %v818 = vunpack.c.l.b16 %v740
      %v819 = vunpack.c.h.b16 %v740
      %v820 = vunpack.c.l.b16 %v741
      %v821 = vunpack.c.h.b16 %v741
      %v822 = vunpack.c.l.b16 %v742
      %v823 = vunpack.c.h.b16 %v742
      %v824 = vunpack.c.l.b16 %v743
      %v825 = vunpack.c.h.b16 %v743
      %v826 = vunpack.c.l.b16 %v744
      %v827 = vunpack.c.h.b16 %v744
      %v828 = vunpack.c.l.b16 %v745
      %v829 = vunpack.c.h.b16 %v745
      %v830 = vunpack.c.l.b16 %v746
      %v831 = vunpack.c.h.b16 %v746
      %v832 = vunpack.c.l.b16 %v747
      %v833 = vunpack.c.h.b16 %v747
      %v834 = vunpack.c.l.b16 %v748
      %v835 = vunpack.c.h.b16 %v748
      %v836 = vunpack.c.l.b16 %v749
      %v837 = vunpack.c.h.b16 %v749
      %v838 = vunpack.c.l.b16 %v750
      %v839 = vunpack.c.h.b16 %v750
      %v840 = vunpack.c.l.b16 %v751
      %v841 = vunpack.c.h.b16 %v751
      %v842 = vunpack.c.l.b16 %v752
      %v843 = vunpack.c.h.b16 %v752
      %v844 = vunpack.c.l.b16 %v753
      %v845 = vunpack.c.h.b16 %v753
      %v846 = vunpack.c.l.b16 %v754
      %v847 = vunpack.c.h.b16 %v754
      %v848 = vunpack.c.l.b16 %v755
      %v849 = vunpack.c.h.b16 %v755
      %v850 = vunpack.c.l.b16 %v756
      %v851 = vunpack.c.h.b16 %v756
      %v852 = vunpack.c.l.b16 %v757
      %v853 = vunpack.c.h.b16 %v757
      %v854 = vpack.c.b16 %v794, %v790
      %v855 = vpack.c.b16 %v795, %v791
      %v856 = vpack.c.b16 %v796, %v792
      %v857 = vpack.c.b16 %v797, %v793
      %v858 = vpack.c.b16 %v802, %v798
      %v859 = vpack.c.b16 %v803, %v799
      %v860 = vpack.c.b16 %v804, %v800
      %v861 = vpack.c.b16 %v805, %v801
      %v862 = vpack.c.b16 %v810, %v806
      %v863 = vpack.c.b16 %v811, %v807
      %v864 = vpack.c.b16 %v812, %v808
      %v865 = vpack.c.b16 %v813, %v809
      %v866 = vpack.c.b16 %v818, %v814
      %v867 = vpack.c.b16 %v819, %v815
      %v868 = vpack.c.b16 %v820, %v816
      %v869 = vpack.c.b16 %v821, %v817
      %v870 = vpack.c.b16 %v826, %v822
      %v871 = vpack.c.b16 %v827, %v823
      %v872 = vpack.c.b16 %v828, %v824
      %v873 = vpack.c.b16 %v829, %v825
      %v874 = vpack.c.b16 %v834, %v830
      %v875 = vpack.c.b16 %v835, %v831
      %v876 = vpack.c.b16 %v836, %v832
      %v877 = vpack.c.b16 %v837, %v833
      %v878 = vpack.c.b16 %v842, %v838
      %v879 = vpack.c.b16 %v843, %v839
      %v880 = vpack.c.b16 %v844, %v840
      %v881 = vpack.c.b16 %v845, %v841
      %v882 = vpack.c.b16 %v850, %v846
      %v883 = vpack.c.b16 %v851, %v847
      %v884 = vpack.c.b16 %v852, %v848
      %v885 = vpack.c.b16 %v853, %v849
      %918 = vmatprep.subr.bf16.mxu0 %v883
      %919 = vmatpush1.bf16.msra.mxu0 %v882
      %920 = vmatprep.subr.bf16.mxu0 %v879
      %921 = vmatpush1.bf16.msra.mxu0 %v878
      %922 = vmatprep.subr.bf16.mxu0 %v875
      %923 = vmatpush1.bf16.msra.mxu0 %v874
      %924 = vmatprep.subr.bf16.mxu0 %v871
      %925 = vmatpush1.bf16.msra.mxu0 %v870
      %926 = vmatprep.subr.bf16.mxu0 %v867
      %927 = vmatpush1.bf16.msra.mxu0 %v866
      %928 = vmatprep.subr.bf16.mxu0 %v863
      %929 = vmatpush1.bf16.msra.mxu0 %v862
      %930 = vmatprep.subr.bf16.mxu0 %v859
      %931 = vmatpush1.bf16.msra.mxu0 %v858
      %932 = vmatprep.subr.bf16.mxu0 %v855
      %933 = vmatpush1.bf16.msra.mxu0 %v854
      %934 = vmatprep.subr.bf16.mxu0 0
      %935 = vmatpush2.bf16.msra.mxu0 0
      %936 = vmatprep.subr.bf16.mxu0 0
      %937 = vmatpush2.bf16.msra.mxu0 0
      %938 = vmatprep.subr.bf16.mxu0 0
      %939 = vmatpush2.bf16.msra.mxu0 0
      %940 = vmatprep.subr.bf16.mxu0 0
      %941 = vmatpush2.bf16.msra.mxu0 0
      %942 = vmatprep.subr.bf16.mxu0 0
      %943 = vmatpush2.bf16.msra.mxu0 0
      %944 = vmatprep.subr.bf16.mxu0 0
      %945 = vmatpush2.bf16.msra.mxu0 0
      %946 = vmatprep.subr.bf16.mxu0 0
      %947 = vmatpush2.bf16.msra.mxu0 0
      %948 = vmatprep.subr.bf16.mxu0 0
      %949 = vmatpush2.bf16.msra.mxu0 0
      %950 = vmatprep.mubr.bf16.mxu0 0
      %951 = vmatmul.mubr.bf16.gmra.mxu0 %v719
      %v952 = vpop.f32.mrf.mxu0
      %v953 = vadd.f32 0.0, %v952
      %v954 = vpop.f32.mrf.mxu0
      %v955 = vadd.f32 0.0, %v954
      %v956 = vpop.f32.mrf.mxu0
      %v957 = vpop.f32.mrf.mxu0
      %958 = vdwg.mxu0
      %959 = vmatprep.subr.bf16.mxu0 %v885
      %960 = vmatpush1.bf16.msra.mxu0 %v884
      %961 = vmatprep.subr.bf16.mxu0 %v881
      %962 = vmatpush1.bf16.msra.mxu0 %v880
      %963 = vmatprep.subr.bf16.mxu0 %v877
      %964 = vmatpush1.bf16.msra.mxu0 %v876
      %965 = vmatprep.subr.bf16.mxu0 %v873
      %966 = vmatpush1.bf16.msra.mxu0 %v872
      %967 = vmatprep.subr.bf16.mxu0 %v869
      %968 = vmatpush1.bf16.msra.mxu0 %v868
      %969 = vmatprep.subr.bf16.mxu0 %v865
      %970 = vmatpush1.bf16.msra.mxu0 %v864
      %971 = vmatprep.subr.bf16.mxu0 %v861
      %972 = vmatpush1.bf16.msra.mxu0 %v860
      %973 = vmatprep.subr.bf16.mxu0 %v857
      %974 = vmatpush1.bf16.msra.mxu0 %v856
      %975 = vmatprep.subr.bf16.mxu0 0
      %976 = vmatpush2.bf16.msra.mxu0 0
      %977 = vmatprep.subr.bf16.mxu0 0
      %978 = vmatpush2.bf16.msra.mxu0 0
      %979 = vmatprep.subr.bf16.mxu0 0
      %980 = vmatpush2.bf16.msra.mxu0 0
      %981 = vmatprep.subr.bf16.mxu0 0
      %982 = vmatpush2.bf16.msra.mxu0 0
      %983 = vmatprep.subr.bf16.mxu0 0
      %984 = vmatpush2.bf16.msra.mxu0 0
      %985 = vmatprep.subr.bf16.mxu0 0
      %986 = vmatpush2.bf16.msra.mxu0 0
      %987 = vmatprep.subr.bf16.mxu0 0
      %988 = vmatpush2.bf16.msra.mxu0 0
      %989 = vmatprep.subr.bf16.mxu0 0
      %990 = vmatpush2.bf16.msra.mxu0 0
      %991 = vmatprep.mubr.bf16.mxu0 0
      %992 = vmatmul.mubr.bf16.gmra.mxu0 %v719
      %v993 = vpop.f32.mrf.mxu0
      %v994 = vadd.f32 0.0, %v993
      %v995 = vpop.f32.mrf.mxu0
      %v996 = vadd.f32 0.0, %v995
      %v997 = vpop.f32.mrf.mxu0
      %v998 = vpop.f32.mrf.mxu0
      %999 = vdwg.mxu0
      %v1000 = vunpack.c.l.bf16 %v724
      %v1001 = vunpack.c.h.bf16 %v724
      %v1002 = vunpack.c.l.bf16 %v725
      %v1003 = vunpack.c.h.bf16 %v725
      %v1004 = vadd.f32 %v1000, %v953
      %v1005 = vadd.f32 %v1001, %v955
      %v1006 = vadd.f32 %v1002, %v994
      %v1007 = vadd.f32 %v1003, %v996
      %v1008 = vpack.c.bf16 %v1004, %v1004
      %v1009 = vpack.c.bf16 %v1005, %v1005
      %v1010 = vpack.c.bf16 %v1006, %v1006
      %v1011 = vpack.c.bf16 %v1007, %v1007
      %v1012 = vxor.u32 %v1008, 2147516416
      %v1014 = vmul.bf16 %v1012, 1069105081
      %v1015 = vpow.bf16.pop %v1014
      %v1016 = vadd.bf16 %v1015, 1065369472
      %v1017 = vrcp.bf16.pop %v1016
      %v1018 = vmul.bf16 1065369472, %v1017
      %v1019 = vxor.u32 %v1009, 2147516416
      %v1021 = vmul.bf16 %v1019, 1069105081
      %v1022 = vpow.bf16.pop %v1021
      %v1023 = vadd.bf16 %v1022, 1065369472
      %v1024 = vrcp.bf16.pop %v1023
      %v1025 = vmul.bf16 1065369472, %v1024
      %v1026 = vtanh.bf16.pop %v1010
      %v1027 = vxor.u32 %v1011, 2147516416
      %v1029 = vmul.bf16 %v1027, 1069105081
      %v1030 = vpow.bf16.pop %v1029
      %v1031 = vadd.bf16 %v1030, 1065369472
      %v1032 = vrcp.bf16.pop %v1031
      %v1033 = vmul.bf16 1065369472, %v1032
      %v1034 = vunpack.c.l.bf16 %v1025
      %v1035 = vmul.f32 %v1034, %v721
      %v1036 = vmul.bf16 %v1018, %v1026
      %v1037 = vunpack.c.l.bf16 %v1036
      %v1038 = vadd.f32 %v1035, %v1037
      %v1039 = vpack.c.bf16 %v1038, %v1038
      %v1040 = vtanh.bf16.pop %v1039
      %v1041 = vmul.bf16 %v1033, %v1040
      %v1042 = vld [vmem:[%s723 + $0x10] sm:$0xff]
      %v1043 = vld [vmem:[%s723 + $0x18] sm:$0xff]
      %1044 = vmatprep.subr.bf16.mxu0 %v883
      %1045 = vmatpush1.bf16.msra.mxu0 %v882
      %1046 = vmatprep.subr.bf16.mxu0 %v879
      %1047 = vmatpush1.bf16.msra.mxu0 %v878
      %1048 = vmatprep.subr.bf16.mxu0 %v875
      %1049 = vmatpush1.bf16.msra.mxu0 %v874
      %1050 = vmatprep.subr.bf16.mxu0 %v871
      %1051 = vmatpush1.bf16.msra.mxu0 %v870
      %1052 = vmatprep.subr.bf16.mxu0 %v867
      %1053 = vmatpush1.bf16.msra.mxu0 %v866
      %1054 = vmatprep.subr.bf16.mxu0 %v863
      %1055 = vmatpush1.bf16.msra.mxu0 %v862
      %1056 = vmatprep.subr.bf16.mxu0 %v859
      %1057 = vmatpush1.bf16.msra.mxu0 %v858
      %1058 = vmatprep.subr.bf16.mxu0 %v855
      %1059 = vmatpush1.bf16.msra.mxu0 %v854
      %1060 = vmatprep.subr.bf16.mxu0 0
      %1061 = vmatpush2.bf16.msra.mxu0 0
      %1062 = vmatprep.subr.bf16.mxu0 0
      %1063 = vmatpush2.bf16.msra.mxu0 0
      %1064 = vmatprep.subr.bf16.mxu0 0
      %1065 = vmatpush2.bf16.msra.mxu0 0
      %1066 = vmatprep.subr.bf16.mxu0 0
      %1067 = vmatpush2.bf16.msra.mxu0 0
      %1068 = vmatprep.subr.bf16.mxu0 0
      %1069 = vmatpush2.bf16.msra.mxu0 0
      %1070 = vmatprep.subr.bf16.mxu0 0
      %1071 = vmatpush2.bf16.msra.mxu0 0
      %1072 = vmatprep.subr.bf16.mxu0 0
      %1073 = vmatpush2.bf16.msra.mxu0 0
      %1074 = vmatprep.subr.bf16.mxu0 0
      %1075 = vmatpush2.bf16.msra.mxu0 0
      %1076 = vmatprep.mubr.bf16.mxu0 0
      %1077 = vmatmul.mubr.bf16.gmra.mxu0 %v720
      %v1078 = vpop.f32.mrf.mxu0
      %v1079 = vadd.f32 0.0, %v1078
      %v1080 = vpop.f32.mrf.mxu0
      %v1081 = vadd.f32 0.0, %v1080
      %v1082 = vpop.f32.mrf.mxu0
      %v1083 = vpop.f32.mrf.mxu0
      %1084 = vdwg.mxu0
      %1085 = vmatprep.subr.bf16.mxu0 %v885
      %1086 = vmatpush1.bf16.msra.mxu0 %v884
      %1087 = vmatprep.subr.bf16.mxu0 %v881
      %1088 = vmatpush1.bf16.msra.mxu0 %v880
      %1089 = vmatprep.subr.bf16.mxu0 %v877
      %1090 = vmatpush1.bf16.msra.mxu0 %v876
      %1091 = vmatprep.subr.bf16.mxu0 %v873
      %1092 = vmatpush1.bf16.msra.mxu0 %v872
      %1093 = vmatprep.subr.bf16.mxu0 %v869
      %1094 = vmatpush1.bf16.msra.mxu0 %v868
      %1095 = vmatprep.subr.bf16.mxu0 %v865
      %1096 = vmatpush1.bf16.msra.mxu0 %v864
      %1097 = vmatprep.subr.bf16.mxu0 %v861
      %1098 = vmatpush1.bf16.msra.mxu0 %v860
      %1099 = vmatprep.subr.bf16.mxu0 %v857
      %1100 = vmatpush1.bf16.msra.mxu0 %v856
      %1101 = vmatprep.subr.bf16.mxu0 0
      %1102 = vmatpush2.bf16.msra.mxu0 0
      %1103 = vmatprep.subr.bf16.mxu0 0
      %1104 = vmatpush2.bf16.msra.mxu0 0
      %1105 = vmatprep.subr.bf16.mxu0 0
      %1106 = vmatpush2.bf16.msra.mxu0 0
      %1107 = vmatprep.subr.bf16.mxu0 0
      %1108 = vmatpush2.bf16.msra.mxu0 0
      %1109 = vmatprep.subr.bf16.mxu0 0
      %1110 = vmatpush2.bf16.msra.mxu0 0
      %1111 = vmatprep.subr.bf16.mxu0 0
      %1112 = vmatpush2.bf16.msra.mxu0 0
      %1113 = vmatprep.subr.bf16.mxu0 0
      %1114 = vmatpush2.bf16.msra.mxu0 0
      %1115 = vmatprep.subr.bf16.mxu0 0
      %1116 = vmatpush2.bf16.msra.mxu0 0
      %1117 = vmatprep.mubr.bf16.mxu0 0
      %1118 = vmatmul.mubr.bf16.gmra.mxu0 %v720
      %v1119 = vpop.f32.mrf.mxu0
      %v1120 = vadd.f32 0.0, %v1119
      %v1121 = vpop.f32.mrf.mxu0
      %v1122 = vadd.f32 0.0, %v1121
      %v1123 = vpop.f32.mrf.mxu0
      %v1124 = vpop.f32.mrf.mxu0
      %1125 = vdwg.mxu0
      %v1126 = vunpack.c.l.bf16 %v1042
      %v1127 = vunpack.c.h.bf16 %v1042
      %v1128 = vunpack.c.l.bf16 %v1043
      %v1129 = vunpack.c.h.bf16 %v1043
      %v1130 = vadd.f32 %v1126, %v1079
      %v1131 = vadd.f32 %v1127, %v1081
      %v1132 = vadd.f32 %v1128, %v1120
      %v1133 = vadd.f32 %v1129, %v1122
      %v1134 = vpack.c.bf16 %v1130, %v1130
      %v1135 = vpack.c.bf16 %v1131, %v1131
      %v1136 = vpack.c.bf16 %v1132, %v1132
      %v1137 = vpack.c.bf16 %v1133, %v1133
      %v1138 = vxor.u32 %v1134, 2147516416
      %v1140 = vmul.bf16 %v1138, 1069105081
      %v1141 = vpow.bf16.pop %v1140
      %v1142 = vadd.bf16 %v1141, 1065369472
      %v1143 = vrcp.bf16.pop %v1142
      %v1144 = vmul.bf16 1065369472, %v1143
      %v1145 = vxor.u32 %v1135, 2147516416
      %v1147 = vmul.bf16 %v1145, 1069105081
      %v1148 = vpow.bf16.pop %v1147
      %v1149 = vadd.bf16 %v1148, 1065369472
      %v1150 = vrcp.bf16.pop %v1149
      %v1151 = vmul.bf16 1065369472, %v1150
      %v1152 = vtanh.bf16.pop %v1136
      %v1153 = vxor.u32 %v1137, 2147516416
      %v1155 = vmul.bf16 %v1153, 1069105081
      %v1156 = vpow.bf16.pop %v1155
      %v1157 = vadd.bf16 %v1156, 1065369472
      %v1158 = vrcp.bf16.pop %v1157
      %v1159 = vmul.bf16 1065369472, %v1158
      %v1160 = vunpack.c.l.bf16 %v1151
      %v1161 = vmul.f32 %v1160, %v722
      %v1162 = vmul.bf16 %v1144, %v1152
      %v1163 = vunpack.c.l.bf16 %v1162
      %v1164 = vadd.f32 %v1161, %v1163
      %v1165 = vpack.c.bf16 %v1164, %v1164
      %v1166 = vtanh.bf16.pop %v1165
      %v1167 = vmul.bf16 %v1159, %v1166
      %s1168 = scalar_lea.vmem [#allocation4], 32
      %v1169 = vld [vmem:[%s1168] sm:$0xff]
      %v1170 = vld [vmem:[%s1168 + $0x8] sm:$0xff]
      %1171 = vmatprep.subr.bf16.mxu0 %v883
      %1172 = vmatpush1.bf16.msra.mxu0 %v882
      %1173 = vmatprep.subr.bf16.mxu0 %v879
      %1174 = vmatpush1.bf16.msra.mxu0 %v878
      %1175 = vmatprep.subr.bf16.mxu0 %v875
      %1176 = vmatpush1.bf16.msra.mxu0 %v874
      %1177 = vmatprep.subr.bf16.mxu0 %v871
      %1178 = vmatpush1.bf16.msra.mxu0 %v870
      %1179 = vmatprep.subr.bf16.mxu0 %v867
      %1180 = vmatpush1.bf16.msra.mxu0 %v866
      %1181 = vmatprep.subr.bf16.mxu0 %v863
      %1182 = vmatpush1.bf16.msra.mxu0 %v862
      %1183 = vmatprep.subr.bf16.mxu0 %v859
      %1184 = vmatpush1.bf16.msra.mxu0 %v858
      %1185 = vmatprep.subr.bf16.mxu0 %v855
      %1186 = vmatpush1.bf16.msra.mxu0 %v854
      %1187 = vmatprep.subr.bf16.mxu0 0
      %1188 = vmatpush2.bf16.msra.mxu0 0
      %1189 = vmatprep.subr.bf16.mxu0 0
      %1190 = vmatpush2.bf16.msra.mxu0 0
      %1191 = vmatprep.subr.bf16.mxu0 0
      %1192 = vmatpush2.bf16.msra.mxu0 0
      %1193 = vmatprep.subr.bf16.mxu0 0
      %1194 = vmatpush2.bf16.msra.mxu0 0
      %1195 = vmatprep.subr.bf16.mxu0 0
      %1196 = vmatpush2.bf16.msra.mxu0 0
      %1197 = vmatprep.subr.bf16.mxu0 0
      %1198 = vmatpush2.bf16.msra.mxu0 0
      %1199 = vmatprep.subr.bf16.mxu0 0
      %1200 = vmatpush2.bf16.msra.mxu0 0
      %1201 = vmatprep.subr.bf16.mxu0 0
      %1202 = vmatpush2.bf16.msra.mxu0 0
      %1203 = vmatprep.mubr.bf16.mxu0 0
      %1204 = vmatmul.mubr.bf16.gmra.mxu0 %v1041
      %v1205 = vpop.f32.mrf.mxu0
      %v1206 = vadd.f32 0.0, %v1205
      %v1207 = vpop.f32.mrf.mxu0
      %v1208 = vadd.f32 0.0, %v1207
      %v1209 = vpop.f32.mrf.mxu0
      %v1210 = vpop.f32.mrf.mxu0
      %1211 = vdwg.mxu0
      %1212 = vmatprep.subr.bf16.mxu0 %v885
      %1213 = vmatpush1.bf16.msra.mxu0 %v884
      %1214 = vmatprep.subr.bf16.mxu0 %v881
      %1215 = vmatpush1.bf16.msra.mxu0 %v880
      %1216 = vmatprep.subr.bf16.mxu0 %v877
      %1217 = vmatpush1.bf16.msra.mxu0 %v876
      %1218 = vmatprep.subr.bf16.mxu0 %v873
      %1219 = vmatpush1.bf16.msra.mxu0 %v872
      %1220 = vmatprep.subr.bf16.mxu0 %v869
      %1221 = vmatpush1.bf16.msra.mxu0 %v868
      %1222 = vmatprep.subr.bf16.mxu0 %v865
      %1223 = vmatpush1.bf16.msra.mxu0 %v864
      %1224 = vmatprep.subr.bf16.mxu0 %v861
      %1225 = vmatpush1.bf16.msra.mxu0 %v860
      %1226 = vmatprep.subr.bf16.mxu0 %v857
      %1227 = vmatpush1.bf16.msra.mxu0 %v856
      %1228 = vmatprep.subr.bf16.mxu0 0
      %1229 = vmatpush2.bf16.msra.mxu0 0
      %1230 = vmatprep.subr.bf16.mxu0 0
      %1231 = vmatpush2.bf16.msra.mxu0 0
      %1232 = vmatprep.subr.bf16.mxu0 0
      %1233 = vmatpush2.bf16.msra.mxu0 0
      %1234 = vmatprep.subr.bf16.mxu0 0
      %1235 = vmatpush2.bf16.msra.mxu0 0
      %1236 = vmatprep.subr.bf16.mxu0 0
      %1237 = vmatpush2.bf16.msra.mxu0 0
      %1238 = vmatprep.subr.bf16.mxu0 0
      %1239 = vmatpush2.bf16.msra.mxu0 0
      %1240 = vmatprep.subr.bf16.mxu0 0
      %1241 = vmatpush2.bf16.msra.mxu0 0
      %1242 = vmatprep.subr.bf16.mxu0 0
      %1243 = vmatpush2.bf16.msra.mxu0 0
      %1244 = vmatprep.mubr.bf16.mxu0 0
      %1245 = vmatmul.mubr.bf16.gmra.mxu0 %v1041
      %v1246 = vpop.f32.mrf.mxu0
      %v1247 = vadd.f32 0.0, %v1246
      %v1248 = vpop.f32.mrf.mxu0
      %v1249 = vadd.f32 0.0, %v1248
      %v1250 = vpop.f32.mrf.mxu0
      %v1251 = vpop.f32.mrf.mxu0
      %1252 = vdwg.mxu0
      %v1253 = vunpack.c.l.bf16 %v1169
      %v1254 = vunpack.c.h.bf16 %v1169
      %v1255 = vunpack.c.l.bf16 %v1170
      %v1256 = vunpack.c.h.bf16 %v1170
      %v1257 = vadd.f32 %v1253, %v1206
      %v1258 = vadd.f32 %v1254, %v1208
      %v1259 = vadd.f32 %v1255, %v1247
      %v1260 = vadd.f32 %v1256, %v1249
      %v1261 = vpack.c.bf16 %v1257, %v1257
      %v1262 = vpack.c.bf16 %v1258, %v1258
      %v1263 = vpack.c.bf16 %v1259, %v1259
      %v1264 = vpack.c.bf16 %v1260, %v1260
      %v1265 = vxor.u32 %v1261, 2147516416
      %v1267 = vmul.bf16 %v1265, 1069105081
      %v1268 = vpow.bf16.pop %v1267
      %v1269 = vadd.bf16 %v1268, 1065369472
      %v1270 = vrcp.bf16.pop %v1269
      %v1271 = vmul.bf16 1065369472, %v1270
      %v1272 = vxor.u32 %v1262, 2147516416
      %v1274 = vmul.bf16 %v1272, 1069105081
      %v1275 = vpow.bf16.pop %v1274
      %v1276 = vadd.bf16 %v1275, 1065369472
      %v1277 = vrcp.bf16.pop %v1276
      %v1278 = vmul.bf16 1065369472, %v1277
      %v1279 = vtanh.bf16.pop %v1263
      %v1280 = vxor.u32 %v1264, 2147516416
      %v1282 = vmul.bf16 %v1280, 1069105081
      %v1283 = vpow.bf16.pop %v1282
      %v1284 = vadd.bf16 %v1283, 1065369472
      %v1285 = vrcp.bf16.pop %v1284
      %v1286 = vmul.bf16 1065369472, %v1285
      %v1287 = vunpack.c.l.bf16 %v1278
      %v1288 = vmul.f32 %v1287, %v1038
      %v1289 = vmul.bf16 %v1271, %v1279
      %v1290 = vunpack.c.l.bf16 %v1289
      %v1291 = vadd.f32 %v1288, %v1290
      %v1292 = vpack.c.bf16 %v1291, %v1291
      %v1293 = vtanh.bf16.pop %v1292
      %v1294 = vmul.bf16 %v1286, %v1293
      %v1295 = vld [vmem:[%s1168 + $0x10] sm:$0xff]
      %v1296 = vld [vmem:[%s1168 + $0x18] sm:$0xff]
      %1297 = vmatprep.subr.bf16.mxu0 %v883
      %1298 = vmatpush1.bf16.msra.mxu0 %v882
      %1299 = vmatprep.subr.bf16.mxu0 %v879
      %1300 = vmatpush1.bf16.msra.mxu0 %v878
      %1301 = vmatprep.subr.bf16.mxu0 %v875
      %1302 = vmatpush1.bf16.msra.mxu0 %v874
      %1303 = vmatprep.subr.bf16.mxu0 %v871
      %1304 = vmatpush1.bf16.msra.mxu0 %v870
      %1305 = vmatprep.subr.bf16.mxu0 %v867
      %1306 = vmatpush1.bf16.msra.mxu0 %v866
      %1307 = vmatprep.subr.bf16.mxu0 %v863
      %1308 = vmatpush1.bf16.msra.mxu0 %v862
      %1309 = vmatprep.subr.bf16.mxu0 %v859
      %1310 = vmatpush1.bf16.msra.mxu0 %v858
      %1311 = vmatprep.subr.bf16.mxu0 %v855
      %1312 = vmatpush1.bf16.msra.mxu0 %v854
      %1313 = vmatprep.subr.bf16.mxu0 0
      %1314 = vmatpush2.bf16.msra.mxu0 0
      %1315 = vmatprep.subr.bf16.mxu0 0
      %1316 = vmatpush2.bf16.msra.mxu0 0
      %1317 = vmatprep.subr.bf16.mxu0 0
      %1318 = vmatpush2.bf16.msra.mxu0 0
      %1319 = vmatprep.subr.bf16.mxu0 0
      %1320 = vmatpush2.bf16.msra.mxu0 0
      %1321 = vmatprep.subr.bf16.mxu0 0
      %1322 = vmatpush2.bf16.msra.mxu0 0
      %1323 = vmatprep.subr.bf16.mxu0 0
      %1324 = vmatpush2.bf16.msra.mxu0 0
      %1325 = vmatprep.subr.bf16.mxu0 0
      %1326 = vmatpush2.bf16.msra.mxu0 0
      %1327 = vmatprep.subr.bf16.mxu0 0
      %1328 = vmatpush2.bf16.msra.mxu0 0
      %1329 = vmatprep.mubr.bf16.mxu0 0
      %1330 = vmatmul.mubr.bf16.gmra.mxu0 %v1167
      %v1331 = vpop.f32.mrf.mxu0
      %v1332 = vadd.f32 0.0, %v1331
      %v1333 = vpop.f32.mrf.mxu0
      %v1334 = vadd.f32 0.0, %v1333
      %v1335 = vpop.f32.mrf.mxu0
      %v1336 = vpop.f32.mrf.mxu0
      %1337 = vdwg.mxu0
      %1338 = vmatprep.subr.bf16.mxu0 %v885
      %1339 = vmatpush1.bf16.msra.mxu0 %v884
      %1340 = vmatprep.subr.bf16.mxu0 %v881
      %1341 = vmatpush1.bf16.msra.mxu0 %v880
      %1342 = vmatprep.subr.bf16.mxu0 %v877
      %1343 = vmatpush1.bf16.msra.mxu0 %v876
      %1344 = vmatprep.subr.bf16.mxu0 %v873
      %1345 = vmatpush1.bf16.msra.mxu0 %v872
      %1346 = vmatprep.subr.bf16.mxu0 %v869
      %1347 = vmatpush1.bf16.msra.mxu0 %v868
      %1348 = vmatprep.subr.bf16.mxu0 %v865
      %1349 = vmatpush1.bf16.msra.mxu0 %v864
      %1350 = vmatprep.subr.bf16.mxu0 %v861
      %1351 = vmatpush1.bf16.msra.mxu0 %v860
      %1352 = vmatprep.subr.bf16.mxu0 %v857
      %1353 = vmatpush1.bf16.msra.mxu0 %v856
      %1354 = vmatprep.subr.bf16.mxu0 0
      %1355 = vmatpush2.bf16.msra.mxu0 0
      %1356 = vmatprep.subr.bf16.mxu0 0
      %1357 = vmatpush2.bf16.msra.mxu0 0
      %1358 = vmatprep.subr.bf16.mxu0 0
      %1359 = vmatpush2.bf16.msra.mxu0 0
      %1360 = vmatprep.subr.bf16.mxu0 0
      %1361 = vmatpush2.bf16.msra.mxu0 0
      %1362 = vmatprep.subr.bf16.mxu0 0
      %1363 = vmatpush2.bf16.msra.mxu0 0
      %1364 = vmatprep.subr.bf16.mxu0 0
      %1365 = vmatpush2.bf16.msra.mxu0 0
      %1366 = vmatprep.subr.bf16.mxu0 0
      %1367 = vmatpush2.bf16.msra.mxu0 0
      %1368 = vmatprep.subr.bf16.mxu0 0
      %1369 = vmatpush2.bf16.msra.mxu0 0
      %1370 = vmatprep.mubr.bf16.mxu0 0
      %1371 = vmatmul.mubr.bf16.gmra.mxu0 %v1167
      %v1372 = vpop.f32.mrf.mxu0
      %v1373 = vadd.f32 0.0, %v1372
      %v1374 = vpop.f32.mrf.mxu0
      %v1375 = vadd.f32 0.0, %v1374
      %v1376 = vpop.f32.mrf.mxu0
      %v1377 = vpop.f32.mrf.mxu0
      %1378 = vdwg.mxu0
      %v1379 = vunpack.c.l.bf16 %v1295
      %v1380 = vunpack.c.h.bf16 %v1295
      %v1381 = vunpack.c.l.bf16 %v1296
      %v1382 = vunpack.c.h.bf16 %v1296
      %v1383 = vadd.f32 %v1379, %v1332
      %v1384 = vadd.f32 %v1380, %v1334
      %v1385 = vadd.f32 %v1381, %v1373
      %v1386 = vadd.f32 %v1382, %v1375
      %v1387 = vpack.c.bf16 %v1383, %v1383
      %v1388 = vpack.c.bf16 %v1384, %v1384
      %v1389 = vpack.c.bf16 %v1385, %v1385
      %v1390 = vpack.c.bf16 %v1386, %v1386
      %v1391 = vxor.u32 %v1387, 2147516416
      %v1393 = vmul.bf16 %v1391, 1069105081
      %v1394 = vpow.bf16.pop %v1393
      %v1395 = vadd.bf16 %v1394, 1065369472
      %v1396 = vrcp.bf16.pop %v1395
      %v1397 = vmul.bf16 1065369472, %v1396
      %v1398 = vxor.u32 %v1388, 2147516416
      %v1400 = vmul.bf16 %v1398, 1069105081
      %v1401 = vpow.bf16.pop %v1400
      %v1402 = vadd.bf16 %v1401, 1065369472
      %v1403 = vrcp.bf16.pop %v1402
      %v1404 = vmul.bf16 1065369472, %v1403
      %v1405 = vtanh.bf16.pop %v1389
      %v1406 = vxor.u32 %v1390, 2147516416
      %v1408 = vmul.bf16 %v1406, 1069105081
      %v1409 = vpow.bf16.pop %v1408
      %v1410 = vadd.bf16 %v1409, 1065369472
      %v1411 = vrcp.bf16.pop %v1410
      %v1412 = vmul.bf16 1065369472, %v1411
      %v1413 = vunpack.c.l.bf16 %v1404
      %v1414 = vmul.f32 %v1413, %v1164
      %v1415 = vmul.bf16 %v1397, %v1405
      %v1416 = vunpack.c.l.bf16 %v1415
      %v1417 = vadd.f32 %v1414, %v1416
      %v1418 = vpack.c.bf16 %v1417, %v1417
      %v1419 = vtanh.bf16.pop %v1418
      %v1420 = vmul.bf16 %v1412, %v1419
      %v1421 = vld [vmem:[#allocation4] sm:$0xff]
      %v1422 = vld [vmem:[#allocation4 + $0x8] sm:$0xff]
      %1423 = vmatprep.subr.bf16.mxu0 %v883
      %1424 = vmatpush1.bf16.msra.mxu0 %v882
      %1425 = vmatprep.subr.bf16.mxu0 %v879
      %1426 = vmatpush1.bf16.msra.mxu0 %v878
      %1427 = vmatprep.subr.bf16.mxu0 %v875
      %1428 = vmatpush1.bf16.msra.mxu0 %v874
      %1429 = vmatprep.subr.bf16.mxu0 %v871
      %1430 = vmatpush1.bf16.msra.mxu0 %v870
      %1431 = vmatprep.subr.bf16.mxu0 %v867
      %1432 = vmatpush1.bf16.msra.mxu0 %v866
      %1433 = vmatprep.subr.bf16.mxu0 %v863
      %1434 = vmatpush1.bf16.msra.mxu0 %v862
      %1435 = vmatprep.subr.bf16.mxu0 %v859
      %1436 = vmatpush1.bf16.msra.mxu0 %v858
      %1437 = vmatprep.subr.bf16.mxu0 %v855
      %1438 = vmatpush1.bf16.msra.mxu0 %v854
      %1439 = vmatprep.subr.bf16.mxu0 0
      %1440 = vmatpush2.bf16.msra.mxu0 0
      %1441 = vmatprep.subr.bf16.mxu0 0
      %1442 = vmatpush2.bf16.msra.mxu0 0
      %1443 = vmatprep.subr.bf16.mxu0 0
      %1444 = vmatpush2.bf16.msra.mxu0 0
      %1445 = vmatprep.subr.bf16.mxu0 0
      %1446 = vmatpush2.bf16.msra.mxu0 0
      %1447 = vmatprep.subr.bf16.mxu0 0
      %1448 = vmatpush2.bf16.msra.mxu0 0
      %1449 = vmatprep.subr.bf16.mxu0 0
      %1450 = vmatpush2.bf16.msra.mxu0 0
      %1451 = vmatprep.subr.bf16.mxu0 0
      %1452 = vmatpush2.bf16.msra.mxu0 0
      %1453 = vmatprep.subr.bf16.mxu0 0
      %1454 = vmatpush2.bf16.msra.mxu0 0
      %1455 = vmatprep.mubr.bf16.mxu0 0
      %1456 = vmatmul.mubr.bf16.gmra.mxu0 %v1294
      %v1457 = vpop.f32.mrf.mxu0
      %v1458 = vadd.f32 0.0, %v1457
      %v1459 = vpop.f32.mrf.mxu0
      %v1460 = vadd.f32 0.0, %v1459
      %v1461 = vpop.f32.mrf.mxu0
      %v1462 = vpop.f32.mrf.mxu0
      %1463 = vdwg.mxu0
      %1464 = vmatprep.subr.bf16.mxu0 %v885
      %1465 = vmatpush1.bf16.msra.mxu0 %v884
      %1466 = vmatprep.subr.bf16.mxu0 %v881
      %1467 = vmatpush1.bf16.msra.mxu0 %v880
      %1468 = vmatprep.subr.bf16.mxu0 %v877
      %1469 = vmatpush1.bf16.msra.mxu0 %v876
      %1470 = vmatprep.subr.bf16.mxu0 %v873
      %1471 = vmatpush1.bf16.msra.mxu0 %v872
      %1472 = vmatprep.subr.bf16.mxu0 %v869
      %1473 = vmatpush1.bf16.msra.mxu0 %v868
      %1474 = vmatprep.subr.bf16.mxu0 %v865
      %1475 = vmatpush1.bf16.msra.mxu0 %v864
      %1476 = vmatprep.subr.bf16.mxu0 %v861
      %1477 = vmatpush1.bf16.msra.mxu0 %v860
      %1478 = vmatprep.subr.bf16.mxu0 %v857
      %1479 = vmatpush1.bf16.msra.mxu0 %v856
      %1480 = vmatprep.subr.bf16.mxu0 0
      %1481 = vmatpush2.bf16.msra.mxu0 0
      %1482 = vmatprep.subr.bf16.mxu0 0
      %1483 = vmatpush2.bf16.msra.mxu0 0
      %1484 = vmatprep.subr.bf16.mxu0 0
      %1485 = vmatpush2.bf16.msra.mxu0 0
      %1486 = vmatprep.subr.bf16.mxu0 0
      %1487 = vmatpush2.bf16.msra.mxu0 0
      %1488 = vmatprep.subr.bf16.mxu0 0
      %1489 = vmatpush2.bf16.msra.mxu0 0
      %1490 = vmatprep.subr.bf16.mxu0 0
      %1491 = vmatpush2.bf16.msra.mxu0 0
      %1492 = vmatprep.subr.bf16.mxu0 0
      %1493 = vmatpush2.bf16.msra.mxu0 0
      %1494 = vmatprep.subr.bf16.mxu0 0
      %1495 = vmatpush2.bf16.msra.mxu0 0
      %1496 = vmatprep.mubr.bf16.mxu0 0
      %1497 = vmatmul.mubr.bf16.gmra.mxu0 %v1294
      %v1498 = vpop.f32.mrf.mxu0
      %v1499 = vadd.f32 0.0, %v1498
      %v1500 = vpop.f32.mrf.mxu0
      %v1501 = vadd.f32 0.0, %v1500
      %v1502 = vpop.f32.mrf.mxu0
      %v1503 = vpop.f32.mrf.mxu0
      %1504 = vdwg.mxu0
      %v1505 = vunpack.c.l.bf16 %v1421
      %v1506 = vunpack.c.h.bf16 %v1421
      %v1507 = vunpack.c.l.bf16 %v1422
      %v1508 = vunpack.c.h.bf16 %v1422
      %v1509 = vadd.f32 %v1505, %v1458
      %v1510 = vadd.f32 %v1506, %v1460
      %v1511 = vadd.f32 %v1507, %v1499
      %v1512 = vadd.f32 %v1508, %v1501
      %v1513 = vpack.c.bf16 %v1509, %v1509
      %v1514 = vpack.c.bf16 %v1510, %v1510
      %v1515 = vpack.c.bf16 %v1511, %v1511
      %v1516 = vpack.c.bf16 %v1512, %v1512
      %v1517 = vxor.u32 %v1513, 2147516416
      %v1519 = vmul.bf16 %v1517, 1069105081
      %v1520 = vpow.bf16.pop %v1519
      %v1521 = vadd.bf16 %v1520, 1065369472
      %v1522 = vrcp.bf16.pop %v1521
      %v1523 = vmul.bf16 1065369472, %v1522
      %v1524 = vxor.u32 %v1514, 2147516416
      %v1526 = vmul.bf16 %v1524, 1069105081
      %v1527 = vpow.bf16.pop %v1526
      %v1528 = vadd.bf16 %v1527, 1065369472
      %v1529 = vrcp.bf16.pop %v1528
      %v1530 = vmul.bf16 1065369472, %v1529
      %v1531 = vtanh.bf16.pop %v1515
      %v1532 = vxor.u32 %v1516, 2147516416
      %v1534 = vmul.bf16 %v1532, 1069105081
      %v1535 = vpow.bf16.pop %v1534
      %v1536 = vadd.bf16 %v1535, 1065369472
      %v1537 = vrcp.bf16.pop %v1536
      %v1538 = vmul.bf16 1065369472, %v1537
      %v1539 = vunpack.c.l.bf16 %v1530
      %v1540 = vmul.f32 %v1539, %v1291
      %v1541 = vmul.bf16 %v1523, %v1531
      %v1542 = vunpack.c.l.bf16 %v1541
      %v1543 = vadd.f32 %v1540, %v1542
      %v1544 = vpack.c.bf16 %v1543, %v1543
      %v1545 = vtanh.bf16.pop %v1544
      %v1546 = vmul.bf16 %v1538, %v1545
      %v1547 = vld [vmem:[#allocation4 + $0x10] sm:$0xff]
      %v1548 = vld [vmem:[#allocation4 + $0x18] sm:$0xff]
      %1549 = vmatprep.subr.bf16.mxu0 %v883
      %1550 = vmatpush1.bf16.msra.mxu0 %v882
      %1551 = vmatprep.subr.bf16.mxu0 %v879
      %1552 = vmatpush1.bf16.msra.mxu0 %v878
      %1553 = vmatprep.subr.bf16.mxu0 %v875
      %1554 = vmatpush1.bf16.msra.mxu0 %v874
      %1555 = vmatprep.subr.bf16.mxu0 %v871
      %1556 = vmatpush1.bf16.msra.mxu0 %v870
      %1557 = vmatprep.subr.bf16.mxu0 %v867
      %1558 = vmatpush1.bf16.msra.mxu0 %v866
      %1559 = vmatprep.subr.bf16.mxu0 %v863
      %1560 = vmatpush1.bf16.msra.mxu0 %v862
      %1561 = vmatprep.subr.bf16.mxu0 %v859
      %1562 = vmatpush1.bf16.msra.mxu0 %v858
      %1563 = vmatprep.subr.bf16.mxu0 %v855
      %1564 = vmatpush1.bf16.msra.mxu0 %v854
      %1565 = vmatprep.subr.bf16.mxu0 0
      %1566 = vmatpush2.bf16.msra.mxu0 0
      %1567 = vmatprep.subr.bf16.mxu0 0
      %1568 = vmatpush2.bf16.msra.mxu0 0
      %1569 = vmatprep.subr.bf16.mxu0 0
      %1570 = vmatpush2.bf16.msra.mxu0 0
      %1571 = vmatprep.subr.bf16.mxu0 0
      %1572 = vmatpush2.bf16.msra.mxu0 0
      %1573 = vmatprep.subr.bf16.mxu0 0
      %1574 = vmatpush2.bf16.msra.mxu0 0
      %1575 = vmatprep.subr.bf16.mxu0 0
      %1576 = vmatpush2.bf16.msra.mxu0 0
      %1577 = vmatprep.subr.bf16.mxu0 0
      %1578 = vmatpush2.bf16.msra.mxu0 0
      %1579 = vmatprep.subr.bf16.mxu0 0
      %1580 = vmatpush2.bf16.msra.mxu0 0
      %1581 = vmatprep.mubr.bf16.mxu0 0
      %1582 = vmatmul.mubr.bf16.gmra.mxu0 %v1420
      %v1583 = vpop.f32.mrf.mxu0
      %v1584 = vadd.f32 0.0, %v1583
      %v1585 = vpop.f32.mrf.mxu0
      %v1586 = vadd.f32 0.0, %v1585
      %v1587 = vpop.f32.mrf.mxu0
      %v1588 = vpop.f32.mrf.mxu0
      %1589 = vdwg.mxu0
      %1590 = vmatprep.subr.bf16.mxu0 %v885
      %1591 = vmatpush1.bf16.msra.mxu0 %v884
      %1592 = vmatprep.subr.bf16.mxu0 %v881
      %1593 = vmatpush1.bf16.msra.mxu0 %v880
      %1594 = vmatprep.subr.bf16.mxu0 %v877
      %1595 = vmatpush1.bf16.msra.mxu0 %v876
      %1596 = vmatprep.subr.bf16.mxu0 %v873
      %1597 = vmatpush1.bf16.msra.mxu0 %v872
      %1598 = vmatprep.subr.bf16.mxu0 %v869
      %1599 = vmatpush1.bf16.msra.mxu0 %v868
      %1600 = vmatprep.subr.bf16.mxu0 %v865
      %1601 = vmatpush1.bf16.msra.mxu0 %v864
      %1602 = vmatprep.subr.bf16.mxu0 %v861
      %1603 = vmatpush1.bf16.msra.mxu0 %v860
      %1604 = vmatprep.subr.bf16.mxu0 %v857
      %1605 = vmatpush1.bf16.msra.mxu0 %v856
      %1606 = vmatprep.subr.bf16.mxu0 0
      %1607 = vmatpush2.bf16.msra.mxu0 0
      %1608 = vmatprep.subr.bf16.mxu0 0
      %1609 = vmatpush2.bf16.msra.mxu0 0
      %1610 = vmatprep.subr.bf16.mxu0 0
      %1611 = vmatpush2.bf16.msra.mxu0 0
      %1612 = vmatprep.subr.bf16.mxu0 0
      %1613 = vmatpush2.bf16.msra.mxu0 0
      %1614 = vmatprep.subr.bf16.mxu0 0
      %1615 = vmatpush2.bf16.msra.mxu0 0
      %1616 = vmatprep.subr.bf16.mxu0 0
      %1617 = vmatpush2.bf16.msra.mxu0 0
      %1618 = vmatprep.subr.bf16.mxu0 0
      %1619 = vmatpush2.bf16.msra.mxu0 0
      %1620 = vmatprep.subr.bf16.mxu0 0
      %1621 = vmatpush2.bf16.msra.mxu0 0
      %1622 = vmatprep.mubr.bf16.mxu0 0
      %1623 = vmatmul.mubr.bf16.gmra.mxu0 %v1420
      %v1624 = vpop.f32.mrf.mxu0
      %v1625 = vadd.f32 0.0, %v1624
      %v1626 = vpop.f32.mrf.mxu0
      %v1627 = vadd.f32 0.0, %v1626
      %v1628 = vpop.f32.mrf.mxu0
      %v1629 = vpop.f32.mrf.mxu0
      %1630 = vdwg.mxu0
      %v1631 = vunpack.c.l.bf16 %v1547
      %v1632 = vunpack.c.h.bf16 %v1547
      %v1633 = vunpack.c.l.bf16 %v1548
      %v1634 = vunpack.c.h.bf16 %v1548
      %v1635 = vadd.f32 %v1631, %v1584
      %v1636 = vadd.f32 %v1632, %v1586
      %v1637 = vadd.f32 %v1633, %v1625
      %v1638 = vadd.f32 %v1634, %v1627
      %v1639 = vpack.c.bf16 %v1635, %v1635
      %v1640 = vpack.c.bf16 %v1636, %v1636
      %v1641 = vpack.c.bf16 %v1637, %v1637
      %v1642 = vpack.c.bf16 %v1638, %v1638
      %v1643 = vxor.u32 %v1639, 2147516416
      %v1645 = vmul.bf16 %v1643, 1069105081
      %v1646 = vpow.bf16.pop %v1645
      %v1647 = vadd.bf16 %v1646, 1065369472
      %v1648 = vrcp.bf16.pop %v1647
      %v1649 = vmul.bf16 1065369472, %v1648
      %v1650 = vxor.u32 %v1640, 2147516416
      %v1652 = vmul.bf16 %v1650, 1069105081
      %v1653 = vpow.bf16.pop %v1652
      %v1654 = vadd.bf16 %v1653, 1065369472
      %v1655 = vrcp.bf16.pop %v1654
      %v1656 = vmul.bf16 1065369472, %v1655
      %v1657 = vtanh.bf16.pop %v1641
      %v1658 = vxor.u32 %v1642, 2147516416
      %v1660 = vmul.bf16 %v1658, 1069105081
      %v1661 = vpow.bf16.pop %v1660
      %v1662 = vadd.bf16 %v1661, 1065369472
      %v1663 = vrcp.bf16.pop %v1662
      %v1664 = vmul.bf16 1065369472, %v1663
      %v1665 = vunpack.c.l.bf16 %v1656
      %v1666 = vmul.f32 %v1665, %v1417
      %v1667 = vmul.bf16 %v1649, %v1657
      %v1668 = vunpack.c.l.bf16 %v1667
      %v1669 = vadd.f32 %v1666, %v1668
      %v1670 = vpack.c.bf16 %v1669, %v1669
      %v1671 = vtanh.bf16.pop %v1670
      %v1672 = vmul.bf16 %v1664, %v1671
      %1673 = vst [vmem:[#allocation2] sm:$0xf] %v1546
      %1674 = vst [vmem:[#allocation3] sm:$0xff] %v1543
      %1675 = vst [vmem:[#allocation2 + $0x4] sm:$0xf] %v1672
      %1676 = vst [vmem:[#allocation3 + $0x8] sm:$0xff] %v1669
      %p1677 = scmp.eq.s32.totalorder %s21, 2
      // Predicated region
      $region45: #{rnn_encoder_forward.1} parent=39 // pred_check
        %p1678 = pneg %p1677
      $region46: #{rnn_encoder_forward.1} parent=39 // pred_check_branch
        %1680 = sbr.rel (%p1678) target = $region48
      $region47: #{rnn_encoder_forward.1} parent=39 // pred_region
        %v1681 = vld [vmem:[#allocation2] sm:$0xf]
        %v1682 = vld [vmem:[#allocation2 + $0x4] sm:$0xf]
        %v1683 = vld [vmem:[%s3] sm:$0xf]
        %v1684 = vld [vmem:[%s3 + $0x4] sm:$0xf]
        %v1685 = vld [vmem:[%s3 + $0x8] sm:$0xf]
        %v1686 = vld [vmem:[%s3 + $0xc] sm:$0xf]
        %v1687 = vld [vmem:[%s3 + $0x10] sm:$0xf]
        %v1688 = vld [vmem:[%s3 + $0x14] sm:$0xf]
        %v1689 = vld [vmem:[%s3 + $0x18] sm:$0xf]
        %v1690 = vld [vmem:[%s3 + $0x1c] sm:$0xf]
        %v1691 = vld [vmem:[%s3 + $0x20] sm:$0xf]
        %v1692 = vld [vmem:[%s3 + $0x24] sm:$0xf]
        %v1693 = vld [vmem:[%s3 + $0x28] sm:$0xf]
        %v1694 = vld [vmem:[%s3 + $0x2c] sm:$0xf]
        %v1695 = vld [vmem:[%s3 + $0x30] sm:$0xf]
        %v1696 = vld [vmem:[%s3 + $0x34] sm:$0xf]
        %v1697 = vld [vmem:[%s3 + $0x38] sm:$0xf]
        %v1698 = vld [vmem:[%s3 + $0x3c] sm:$0xf]
        %v1699 = vld [vmem:[%s4] sm:$0x1]
        %v1701 = vlaneseq
        %v1702 = vshrl.u32 %v1701, 7
        %v1703 = vsub.s32 0, %v1702
        %v1704 = vrot.slane %v1699, %v1703
        %v1708 = vunpack.c.l.b16 %v1681
        %v1709 = vunpack.c.l.b16 %v1682
        %v1710 = vpack.c.b16 %v1709, %v1708
        %v1728 = vunpack.c.l.b16 %v1683
        %v1729 = vunpack.c.l.b16 %v1684
        %v1730 = vunpack.c.l.b16 %v1685
        %v1731 = vunpack.c.l.b16 %v1686
        %v1732 = vunpack.c.l.b16 %v1687
        %v1733 = vunpack.c.l.b16 %v1688
        %v1734 = vunpack.c.l.b16 %v1689
        %v1735 = vunpack.c.l.b16 %v1690
        %v1736 = vunpack.c.l.b16 %v1691
        %v1737 = vunpack.c.l.b16 %v1692
        %v1738 = vunpack.c.l.b16 %v1693
        %v1739 = vunpack.c.l.b16 %v1694
        %v1740 = vunpack.c.l.b16 %v1695
        %v1741 = vunpack.c.l.b16 %v1696
        %v1742 = vunpack.c.l.b16 %v1697
        %v1743 = vunpack.c.l.b16 %v1698
        %v1744 = vpack.c.b16 %v1729, %v1728
        %v1745 = vpack.c.b16 %v1731, %v1730
        %v1746 = vpack.c.b16 %v1733, %v1732
        %v1747 = vpack.c.b16 %v1735, %v1734
        %v1748 = vpack.c.b16 %v1737, %v1736
        %v1749 = vpack.c.b16 %v1739, %v1738
        %v1750 = vpack.c.b16 %v1741, %v1740
        %v1751 = vpack.c.b16 %v1743, %v1742
        %1760 = vmatprep.subr.bf16.mxu0 0
        %1761 = vmatpush1.bf16.msra.mxu0 %v1751
        %1762 = vmatprep.subr.bf16.mxu0 0
        %1763 = vmatpush1.bf16.msra.mxu0 %v1750
        %1764 = vmatprep.subr.bf16.mxu0 0
        %1765 = vmatpush1.bf16.msra.mxu0 %v1749
        %1766 = vmatprep.subr.bf16.mxu0 0
        %1767 = vmatpush1.bf16.msra.mxu0 %v1748
        %1768 = vmatprep.subr.bf16.mxu0 0
        %1769 = vmatpush1.bf16.msra.mxu0 %v1747
        %1770 = vmatprep.subr.bf16.mxu0 0
        %1771 = vmatpush1.bf16.msra.mxu0 %v1746
        %1772 = vmatprep.subr.bf16.mxu0 0
        %1773 = vmatpush1.bf16.msra.mxu0 %v1745
        %1774 = vmatprep.subr.bf16.mxu0 0
        %1775 = vmatpush1.bf16.msra.mxu0 %v1744
        %1776 = vmatprep.subr.bf16.mxu0 0
        %1777 = vmatpush2.bf16.msra.mxu0 0
        %1778 = vmatprep.subr.bf16.mxu0 0
        %1779 = vmatpush2.bf16.msra.mxu0 0
        %1780 = vmatprep.subr.bf16.mxu0 0
        %1781 = vmatpush2.bf16.msra.mxu0 0
        %1782 = vmatprep.subr.bf16.mxu0 0
        %1783 = vmatpush2.bf16.msra.mxu0 0
        %1784 = vmatprep.subr.bf16.mxu0 0
        %1785 = vmatpush2.bf16.msra.mxu0 0
        %1786 = vmatprep.subr.bf16.mxu0 0
        %1787 = vmatpush2.bf16.msra.mxu0 0
        %1788 = vmatprep.subr.bf16.mxu0 0
        %1789 = vmatpush2.bf16.msra.mxu0 0
        %1790 = vmatprep.subr.bf16.mxu0 0
        %1791 = vmatpush2.bf16.msra.mxu0 0
        %1792 = vmatprep.mubr.bf16.mxu0 0
        %1793 = vmatmul.mubr.bf16.gmra.mxu0 %v1710
        %v1794 = vpop.f32.mrf.mxu0
        %v1795 = vadd.f32 %v1704, %v1794
        %v1796 = vpop.f32.mrf.mxu0
        %v1797 = vpop.f32.mrf.mxu0
        %v1798 = vadd.f32 %v1704, %v1797
        %v1799 = vpop.f32.mrf.mxu0
        %1800 = vdwg.mxu0
        %1801 = vst [vmem:[%s264] sm:$0xff] %v1795
        %1802 = vst [vmem:[%s264 + $0x8] sm:$0xff] %v1798
      $region48: #{rnn_encoder_forward.1} parent=39 // pred_fallthru
        _
      %s1803 = smul.u32 2, %s20
      %p1804 = scmp.lt.s32.totalorder %s1803, 1
      %s1805 = scalar_select %p1804, %s1803, 1
      %s1806 = smul.addr %s1805, 8
      %s1807 = scalar_lea.vmem %s5, %s1806
      // Predicated region
      $region49: #{rnn_encoder_forward.1} parent=39 // pred_check
        %p1808 = pneg %p160
      $region50: #{rnn_encoder_forward.1} parent=39 // pred_check_branch
        %1810 = sbr.rel (%p1808) target = $region52
      $region51: #{rnn_encoder_forward.1} parent=39 // pred_region
        %s1811 = smul.u32 2, %s20
      $region52: #{rnn_encoder_forward.1} parent=39 // pred_fallthru
        _
      // Predicated region
      $region53: #{rnn_encoder_forward.1} parent=39 // pred_check
        %p1812 = pneg %p160
      $region54: #{rnn_encoder_forward.1} parent=39 // pred_check_branch
        %1814 = sbr.rel (%p1812) target = $region56
      $region55: #{rnn_encoder_forward.1} parent=39 // pred_region
        %s1815 = smul.u32 2, %s20
        %p1816 = scmp.lt.s32.totalorder %s1815, 1
        %s1817 = scalar_select %p1816, %s1815, 1
        %s1818 = smul.addr %s1817, 8
        %s1819 = scalar_lea.vmem %s5, %s1818
      $region56: #{rnn_encoder_forward.1} parent=39 // pred_fallthru
        _
    $region40: #{rnn_encoder_forward.1} parent=5 // pred_fallthru
      _
    %p1820 = scmp.le.s32.totalorder 2, %s11
    // Predicated region
    $region57: #{rnn_encoder_forward.1} parent=5 // pred_check
      %p1821 = pneg %p1820
    $region58: #{rnn_encoder_forward.1} parent=5 // pred_check_branch
      %1823 = sbr.rel (%p1821) target = $region60
    $region59: #{rnn_encoder_forward.1} parent=5 // pred_region
      %s1824 = ssub.s32 %s11, 2
    $region60: #{rnn_encoder_forward.1} parent=5 // pred_fallthru
      _
  $region6: #{rnn_encoder_forward.1} parent=0 // loop_footer
    %s15 = sadd.s32 1, %s11
  $region7: #{rnn_encoder_forward.1} parent=0 // loop_footer_branch
    %10 = sbr.rel target = $region3
  $region8: #{rnn_encoder_forward.1} parent=0 // loop_exit
    _

</llo_original>
